<compile_context>
chip_gen: v7x
topology: tpu7x:2x2x1
jax: 0.10.0
libtpu: 0.0.40
codegen_flags: <defaults>
</compile_context>

<pallas_src>
import numpy as np
import jax
import jax.numpy as jnp
from jax import lax
from jax.experimental import pallas as pl
from jax.experimental.pallas import tpu as pltpu

# ----------------------------- configuration (args) ---------------------------------
B = 2             # batch
A = 2             # aspect_num (input_cat_ids.shape[1])
L = 16            # bert sequence length
T = 8             # word_indexer length (text words)
D = 32            # embedding_dim (bert hidden size)
H = 32            # final_hidden_size
C = 3             # num_classes
NUM_HEADS = 2     # args.num_heads
DH = D // NUM_HEADS
VOCAB = 30
VOCAB_PAD = 32    # token one-hot width (>= VOCAB)
DEP_TAG_NUM = 5   # len(dep_tag_vocab['stoi'])
DEP_PAD = 8       # dep one-hot width (>= DEP_TAG_NUM + 1)
NUM_NODE_TYPE = 2
BA = B * A        # flattened batch * aspect                  = 4
BAL = BA * L      # flat (batch*aspect, seq) rows             = 64
BAT = BA * T      # flat word-node rows                       = 32
NASP = BA * A     # flat aspect-node rows                     = 8
NTOT = BAT + NASP  # total graph nodes in the flat node slab  = 40
NHQ = NUM_HEADS * BA  # fused (head, query) rows              = 8

SLAB_W = 64       # lane width of both packed slabs

# ---------------------- data (runtime) slab layout: int32 (144, 64) ------------------
CAT_OFF = 0                    # rows [0,64):   token ids, broadcast across lanes
GIDX_OFF = CAT_OFF + BAL       # rows [64,96):  word_indexer gather row indices
DEP_OFF = GIDX_OFF + BAT       # rows [96,128): dep tag ids
SEG_OFF = DEP_OFF + BAT        # row 128:       segment ids (lanes 0:64)
WI_OFF = SEG_OFF + 8           # row 136:       word-indexer mask ids (lanes 0:40)
DATA_ROWS = WI_OFF + 8         # 144


# ---------------------- parameter/constant slab layout: f32 (408, 64) ----------------
def _build_param_layout():
    entries = [
        ("tok_emb", (VOCAB_PAD, D)),
        ("W_enc", (D, D)), ("b_enc", (1, D)),
        ("W_pool", (D, D)), ("b_pool", (1, D)),
        ("dep_emb", (DEP_PAD, D)),
        ("type0", (1, D)), ("type1", (1, D)),
        ("Wq_pad", (D, 2 * D)),           # [0 | Wq * DH**-0.5]
        ("Wkv", (D, 2 * D)),              # [Wv | Wk]
        ("W1", (D, H)), ("b1", (1, H)),
        ("W2", (H, H)), ("b2", (1, H)),
        ("Wf", (H, C)), ("bf", (1, C)),
        ("cw0", (1, D)), ("cw1", (1, D)),          # softmax(channel_w) pre-broadcast
        ("own_oh", (BA, BAL)),                     # aspect pooling selector
        ("cls_sel", (BA, BAL)),                    # CLS row selector
        ("asel", (NHQ + 2 * NASP, BA)),            # [dup2; head_sel; tail_sel]
        ("hm_qk", (NHQ, 2 * D)),                   # per-(head,query) q/k lane mask
        ("hm_v", (NHQ, D)),                        # per-(head,query) v lane mask
        ("sum_sel", (BA, NHQ)),                    # head-block -> query sum selector
        ("bias_own", (NHQ, NTOT)),                 # 0 / -1e30 ownership bias
    ]
    layout, off = {}, 0
    for name, (r, c) in entries:
        layout[name] = (off, r, c)
        off += (r + 7) // 8 * 8
    return layout, off


PARAM_LAYOUT, PARAM_ROWS = _build_param_layout()


# ================================ fused Pallas kernel ================================
def fused_kernel(d_ref, p_ref, out_ref):
    f32 = jnp.float32

    def P(name):
        off, r, c = PARAM_LAYOUT[name]
        return p_ref[off:off + r, 0:c]

    # ---- synthetic BERT encoder: token one-hot gather (MXU) + tanh projection ----
    # TODO(synk): pretrained BertModel replaced by embedding lookup + tanh projection.
    tok_oh = (d_ref[CAT_OFF:CAT_OFF + BAL, 0:VOCAB_PAD] ==
              lax.broadcasted_iota(jnp.int32, (BAL, VOCAB_PAD), 1)).astype(f32)
    emb = jnp.dot(tok_oh, P("tok_emb"), preferred_element_type=f32)            # (64,32)
    feat = jnp.tanh(jnp.dot(emb, P("W_enc"), preferred_element_type=f32) + P("b_enc"))

    # ---- segment-weighted aspect pooling + CLS pooler (seg folded into selector) ----
    seg_row = d_ref[SEG_OFF:SEG_OFF + 1, 0:BAL].astype(f32)                    # (1,64)
    aspect_feat = jnp.dot(P("own_oh") * seg_row, feat,
                          preferred_element_type=f32)                          # (4,32)
    cls = jnp.dot(P("cls_sel"), feat, preferred_element_type=f32)              # (4,32)
    pool_out = jnp.tanh(jnp.dot(cls, P("W_pool"), preferred_element_type=f32)
                        + P("b_pool"))

    # ---- word nodes: word_indexer gather + dep embedding (one-hot MXU matmuls) ----
    gath_oh = (d_ref[GIDX_OFF:GIDX_OFF + BAT, 0:BAL] ==
               lax.broadcasted_iota(jnp.int32, (BAT, BAL), 1)).astype(f32)
    word_feat = jnp.dot(gath_oh, feat, preferred_element_type=f32)             # (32,32)
    dep_oh = (d_ref[DEP_OFF:DEP_OFF + BAT, 0:DEP_PAD] ==
              lax.broadcasted_iota(jnp.int32, (BAT, DEP_PAD), 1)).astype(f32)
    word_dep = jnp.dot(dep_oh, P("dep_emb"), preferred_element_type=f32)       # (32,32)
    word_nodes = word_feat + word_dep + P("type0")

    # ---- aspect nodes + replicated queries via ONE fused selector matmul ----
    # TODO(synk): Disen_GAT_For_Multi_Aspect source not provided; plausible masked
    #             attention head, inter_aspect_edge='composed', opn='mult'.
    asel = jnp.dot(P("asel"), aspect_feat, preferred_element_type=f32)         # (24,32)
    q_rep = asel[0:NHQ, :]                                                     # (8,32)
    asp_head = asel[NHQ:NHQ + NASP, :]                                         # (8,32)
    asp_tail = asel[NHQ + NASP:NHQ + 2 * NASP, :]                              # (8,32)
    asp_nodes = asp_tail + asp_head * asp_tail + P("type1")

    nodes = jnp.concatenate([word_nodes, asp_nodes], axis=0)                   # (40,32)

    # ---- fused 2-head masked attention: one score matmul, one softmax ----
    kv = jnp.dot(nodes, P("Wkv"), preferred_element_type=f32)                  # (40,64)=[V|K]
    qm = jnp.dot(q_rep, P("Wq_pad"), preferred_element_type=f32) * P("hm_qk")  # (8,64)
    s = lax.dot_general(qm, kv, (((1,), (1,)), ((), ())),
                        preferred_element_type=f32)                            # (8,40)
    s = s + P("bias_own")                                  # block-diagonal ownership bias
    wi_ok = d_ref[WI_OFF:WI_OFF + 1, 0:NTOT] != 1          # data-dependent word mask
    s = jnp.where(wi_ok, s, -1e30)
    s = s - jnp.max(s, axis=-1, keepdims=True)
    e = jnp.exp(s)
    attn = e * pl.reciprocal(jnp.sum(e, axis=-1, keepdims=True), approx=True)
    out8 = jnp.dot(attn, kv[:, 0:D], preferred_element_type=f32)               # (8,32)
    feature_out = jnp.dot(P("sum_sel"), out8 * P("hm_v"),
                          preferred_element_type=f32)                          # (4,32)

    # ---- GraphChannelAttLayer (softmax weights precomputed host-side) + fcs + final ----
    # TODO(synk): GraphChannelAttLayer / Highway source not provided; softmax channel
    #             fusion, highway=False, dropout=identity (eval mode).
    x = feature_out * P("cw0") + pool_out * P("cw1")
    h1 = jnp.maximum(jnp.dot(x, P("W1"), preferred_element_type=f32) + P("b1"), 0.0)
    h2 = jnp.maximum(jnp.dot(h1, P("W2"), preferred_element_type=f32) + P("b2"), 0.0)
    out_ref[...] = jnp.dot(h2, P("Wf"), preferred_element_type=f32) + P("bf")


# ================================ static constants ===================================
def _make_static_constants():
    own_oh = np.zeros((BA, BAL), np.float32)
    cls_sel = np.zeros((BA, BAL), np.float32)
    for a in range(BA):
        own_oh[a, a * L:(a + 1) * L] = 1.0
        cls_sel[a, a * L] = 1.0
    # query duplication + aspect-node head/tail selectors (composed inter-aspect edge)
    dup2 = np.zeros((NHQ, BA), np.float32)
    for r in range(NHQ):
        dup2[r, r % BA] = 1.0
    hs = np.zeros((NASP, BA), np.float32)
    ts = np.zeros((NASP, BA), np.float32)
    for ba in range(BA):
        b = ba // A
        for j in range(A):
            r = ba * A + j
            hs[r, ba] = 1.0
            ts[r, b * A + j] = 1.0
    asel = np.concatenate([dup2, hs, ts], axis=0)                     # (24, 4)
    # fused-head lane masks and block-sum selector
    hm_qk = np.zeros((NHQ, 2 * D), np.float32)
    hm_v = np.zeros((NHQ, D), np.float32)
    sum_sel = np.zeros((BA, NHQ), np.float32)
    for r in range(NHQ):
        h, q = r // BA, r % BA
        hm_qk[r, D + h * DH:D + (h + 1) * DH] = 1.0
        hm_v[r, h * DH:(h + 1) * DH] = 1.0
        sum_sel[q, r] = 1.0
    # block-diagonal ownership bias over the flat node slab
    n = np.arange(NTOT)
    owner = np.where(n < BAT, n // T, (n - BAT) // A)
    bias_own = np.zeros((NHQ, NTOT), np.float32)
    for r in range(NHQ):
        bias_own[r] = np.where(owner == (r % BA), 0.0, -1e30)
    return dict(own_oh=own_oh, cls_sel=cls_sel, asel=asel, hm_qk=hm_qk,
                hm_v=hm_v, sum_sel=sum_sel, bias_own=bias_own)


# ================================ parameter init =====================================
def init_params(key):
    ks = jax.random.split(key, 11)
    s = 0.08
    tok_emb = s * jax.random.normal(ks[0], (VOCAB_PAD, D), jnp.float32)
    W_enc = s * jax.random.normal(ks[1], (D, D), jnp.float32)
    W_pool = s * jax.random.normal(ks[2], (D, D), jnp.float32)
    dep_emb = s * jax.random.normal(ks[3], (DEP_PAD, D), jnp.float32)
    dep_emb = dep_emb.at[0].set(0.0)                          # padding_idx=0
    type_emb = s * jax.random.normal(ks[4], (NUM_NODE_TYPE, D), jnp.float32)
    Wq = s * jax.random.normal(ks[5], (D, D), jnp.float32)
    Wk = s * jax.random.normal(ks[6], (D, D), jnp.float32)
    Wv = s * jax.random.normal(ks[7], (D, D), jnp.float32)
    W1 = s * jax.random.normal(ks[8], (D, H), jnp.float32)
    W2 = s * jax.random.normal(ks[9], (H, H), jnp.float32)
    Wf = s * jax.random.normal(ks[10], (H, C), jnp.float32)
    channel_w = jnp.full((2,), 0.1, jnp.float32)              # GraphChannelAttLayer
    cw = jax.nn.softmax(channel_w)                            # param-only transform

    vals = dict(
        tok_emb=tok_emb,
        W_enc=W_enc, b_enc=jnp.zeros((1, D), jnp.float32),
        W_pool=W_pool, b_pool=jnp.zeros((1, D), jnp.float32),
        dep_emb=dep_emb,
        type0=type_emb[0:1, :], type1=type_emb[1:2, :],
        Wq_pad=jnp.concatenate([jnp.zeros((D, D), jnp.float32),
                                Wq * (DH ** -0.5)], axis=1),
        Wkv=jnp.concatenate([Wv, Wk], axis=1),
        W1=W1, b1=jnp.zeros((1, H), jnp.float32),
        W2=W2, b2=jnp.zeros((1, H), jnp.float32),
        Wf=Wf, bf=jnp.zeros((1, C), jnp.float32),
        cw0=jnp.broadcast_to(cw[0], (1, D)),
        cw1=jnp.broadcast_to(cw[1], (1, D)),
    )
    vals.update({k: jnp.asarray(v) for k, v in _make_static_constants().items()})

    slab = jnp.zeros((PARAM_ROWS, SLAB_W), jnp.float32)
    for name, (off, r, c) in PARAM_LAYOUT.items():
        slab = slab.at[off:off + r, 0:c].set(
            jnp.asarray(vals[name], jnp.float32).reshape(r, c))
    return slab


# ================================ forward (thin host glue) ===========================
def rel_overall_forward(p_slab, input_cat_ids, segment_ids, word_indexer, dep_tags):
    # host glue: flatten + lane-broadcast the runtime integer inputs into ONE slab
    cat = jnp.broadcast_to(input_cat_ids.reshape(BAL, 1).astype(jnp.int32),
                           (BAL, SLAB_W))
    wi_re = jnp.broadcast_to(word_indexer[:, None, :],
                             (B, A, T)).reshape(BA, T).astype(jnp.int32)
    gidx = jnp.arange(BA, dtype=jnp.int32)[:, None] * L + wi_re
    gidx_b = jnp.broadcast_to(gidx.reshape(BAT, 1), (BAT, SLAB_W))
    dep_b = jnp.broadcast_to(dep_tags.reshape(BAT, 1).astype(jnp.int32), (BAT, SLAB_W))
    seg_blk = jnp.zeros((8, SLAB_W), jnp.int32).at[0, :BAL].set(
        segment_ids.reshape(BAL).astype(jnp.int32))
    # word-indexer mask ids: pad token is 1 -> masked; CLS-exempt cols (t % T == 0)
    # and aspect cols are forced to 0 (always allowed) so the kernel only needs `!= 1`.
    wi_masked = jnp.where(jnp.arange(BAT) % T == 0, 0, wi_re.reshape(BAT))
    wi_ext = jnp.concatenate([wi_masked, jnp.zeros((NASP,), jnp.int32)])
    wi_blk = jnp.zeros((8, SLAB_W), jnp.int32).at[0, :NTOT].set(wi_ext)
    dslab = jnp.concatenate([cat, gidx_b, dep_b, seg_blk, wi_blk], axis=0)  # (144,64)

    logits = pl.pallas_call(
        fused_kernel,
        out_shape=jax.ShapeDtypeStruct((BA, C), jnp.float32),
        in_specs=[pl.BlockSpec(memory_space=pltpu.MemorySpace.VMEM),
                  pl.BlockSpec(memory_space=pltpu.MemorySpace.VMEM)],
        out_specs=pl.BlockSpec(memory_space=pltpu.MemorySpace.VMEM),
    )(dslab, p_slab)
    return logits.reshape(B, A, C)


# ===================================== main ==========================================
if __name__ == "__main__":
    key = jax.random.PRNGKey(0)
    kp, k1, k2, k3 = jax.random.split(key, 4)

    p_slab = init_params(kp)

    input_cat_ids = jax.random.randint(k1, (B, A, L), 2, VOCAB, dtype=jnp.int32)
    # segment_ids: last 4 tokens of each sequence belong to the aspect segment
    segment_ids = jnp.concatenate(
        [jnp.zeros((B, A, L - 4), jnp.int32), jnp.ones((B, A, 4), jnp.int32)], axis=-1)
    word_indexer = jax.random.randint(k2, (B, T), 0, L, dtype=jnp.int32)
    dep_tags = jax.random.randint(k3, (B, A, T), 0, DEP_TAG_NUM + 1, dtype=jnp.int32)

    fwd = jax.jit(rel_overall_forward)
    logits = fwd(p_slab, input_cat_ids, segment_ids, word_indexer, dep_tags)
    logits = jax.block_until_ready(logits)
    assert logits.shape == (B, A, C), logits.shape
    print("KERNEL_OK")
</pallas_src>

<mosaic_0001>
module attributes {stable_mosaic.version = 11 : i64} {
  func.func @fused_kernel(%arg0: memref<144x64xi32, #tpu.memory_space<vmem>>, %arg1: memref<408x64xf32, #tpu.memory_space<vmem>>, %arg2: memref<4x3xf32, #tpu.memory_space<vmem>>) attributes {dimension_semantics = [], scalar_prefetch = 0 : i64, scratch_operands = 0 : i64, tpu.core_type = #tpu.core_type<tc>} {
    %c0 = arith.constant 0 : index
    %c0_0 = arith.constant 0 : index
    %0 = vector.load %arg0[%c0, %c0_0] : memref<144x64xi32, #tpu.memory_space<vmem>>, vector<64x32xi32>
    %1 = tpu.iota {dimensions = array<i32: 1>} : vector<64x32xi32>
    %2 = arith.cmpi eq, %0, %1 : vector<64x32xi32>
    %3 = arith.extui %2 : vector<64x32xi1> to vector<64x32xi32>
    %4 = arith.sitofp %3 : vector<64x32xi32> to vector<64x32xf32>
    %c0_1 = arith.constant 0 : index
    %c0_2 = arith.constant 0 : index
    %5 = vector.load %arg1[%c0_1, %c0_2] : memref<408x64xf32, #tpu.memory_space<vmem>>, vector<32x32xf32>
    %cst = arith.constant dense<0.000000e+00> : vector<64x32xf32>
    %6 = tpu.matmul %4, %5, %cst {dimension_numbers = #tpu.dot_dimension_numbers<[1], [0], [0], [1], [0, 0, 1, 1], [], []>} : vector<64x32xf32>, vector<32x32xf32>, vector<64x32xf32> -> vector<64x32xf32>
    %c32 = arith.constant 32 : index
    %c0_3 = arith.constant 0 : index
    %7 = vector.load %arg1[%c32, %c0_3] : memref<408x64xf32, #tpu.memory_space<vmem>>, vector<32x32xf32>
    %cst_4 = arith.constant dense<0.000000e+00> : vector<64x32xf32>
    %8 = tpu.matmul %6, %7, %cst_4 {dimension_numbers = #tpu.dot_dimension_numbers<[1], [0], [0], [1], [0, 0, 1, 1], [], []>} : vector<64x32xf32>, vector<32x32xf32>, vector<64x32xf32> -> vector<64x32xf32>
    %c64 = arith.constant 64 : index
    %c0_5 = arith.constant 0 : index
    %9 = vector.load %arg1[%c64, %c0_5] : memref<408x64xf32, #tpu.memory_space<vmem>>, vector<1x32xf32>
    %10 = vector.broadcast %9 : vector<1x32xf32> to vector<64x32xf32>
    %11 = arith.addf %8, %10 : vector<64x32xf32>
    %12 = math.tanh %11 : vector<64x32xf32>
    %c128 = arith.constant 128 : index
    %c0_6 = arith.constant 0 : index
    %13 = vector.load %arg0[%c128, %c0_6] : memref<144x64xi32, #tpu.memory_space<vmem>>, vector<1x64xi32>
    %14 = arith.sitofp %13 : vector<1x64xi32> to vector<1x64xf32>
    %c336 = arith.constant 336 : index
    %c0_7 = arith.constant 0 : index
    %15 = vector.load %arg1[%c336, %c0_7] : memref<408x64xf32, #tpu.memory_space<vmem>>, vector<4x64xf32>
    %16 = vector.broadcast %14 : vector<1x64xf32> to vector<4x64xf32>
    %17 = arith.mulf %15, %16 : vector<4x64xf32>
    %cst_8 = arith.constant dense<0.000000e+00> : vector<4x32xf32>
    %18 = tpu.matmul %17, %12, %cst_8 {dimension_numbers = #tpu.dot_dimension_numbers<[1], [0], [0], [1], [0, 0, 1, 1], [], []>} : vector<4x64xf32>, vector<64x32xf32>, vector<4x32xf32> -> vector<4x32xf32>
    %c344 = arith.constant 344 : index
    %c0_9 = arith.constant 0 : index
    %19 = vector.load %arg1[%c344, %c0_9] : memref<408x64xf32, #tpu.memory_space<vmem>>, vector<4x64xf32>
    %cst_10 = arith.constant dense<0.000000e+00> : vector<4x32xf32>
    %20 = tpu.matmul %19, %12, %cst_10 {dimension_numbers = #tpu.dot_dimension_numbers<[1], [0], [0], [1], [0, 0, 1, 1], [], []>} : vector<4x64xf32>, vector<64x32xf32>, vector<4x32xf32> -> vector<4x32xf32>
    %c72 = arith.constant 72 : index
    %c0_11 = arith.constant 0 : index
    %21 = vector.load %arg1[%c72, %c0_11] : memref<408x64xf32, #tpu.memory_space<vmem>>, vector<32x32xf32>
    %cst_12 = arith.constant dense<0.000000e+00> : vector<4x32xf32>
    %22 = tpu.matmul %20, %21, %cst_12 {dimension_numbers = #tpu.dot_dimension_numbers<[1], [0], [0], [1], [0, 0, 1, 1], [], []>} : vector<4x32xf32>, vector<32x32xf32>, vector<4x32xf32> -> vector<4x32xf32>
    %c104 = arith.constant 104 : index
    %c0_13 = arith.constant 0 : index
    %23 = vector.load %arg1[%c104, %c0_13] : memref<408x64xf32, #tpu.memory_space<vmem>>, vector<1x32xf32>
    %24 = vector.broadcast %23 : vector<1x32xf32> to vector<4x32xf32>
    %25 = arith.addf %22, %24 : vector<4x32xf32>
    %26 = math.tanh %25 : vector<4x32xf32>
    %c64_14 = arith.constant 64 : index
    %c0_15 = arith.constant 0 : index
    %27 = vector.load %arg0[%c64_14, %c0_15] : memref<144x64xi32, #tpu.memory_space<vmem>>, vector<32x64xi32>
    %28 = tpu.iota {dimensions = array<i32: 1>} : vector<32x64xi32>
    %29 = arith.cmpi eq, %27, %28 : vector<32x64xi32>
    %30 = arith.extui %29 : vector<32x64xi1> to vector<32x64xi32>
    %31 = arith.sitofp %30 : vector<32x64xi32> to vector<32x64xf32>
    %cst_16 = arith.constant dense<0.000000e+00> : vector<32x32xf32>
    %32 = tpu.matmul %31, %12, %cst_16 {dimension_numbers = #tpu.dot_dimension_numbers<[1], [0], [0], [1], [0, 0, 1, 1], [], []>} : vector<32x64xf32>, vector<64x32xf32>, vector<32x32xf32> -> vector<32x32xf32>
    %c96 = arith.constant 96 : index
    %c0_17 = arith.constant 0 : index
    %33 = vector.load %arg0[%c96, %c0_17] : memref<144x64xi32, #tpu.memory_space<vmem>>, vector<32x8xi32>
    %34 = tpu.iota {dimensions = array<i32: 1>} : vector<32x8xi32>
    %35 = arith.cmpi eq, %33, %34 : vector<32x8xi32>
    %36 = arith.extui %35 : vector<32x8xi1> to vector<32x8xi32>
    %37 = arith.sitofp %36 : vector<32x8xi32> to vector<32x8xf32>
    %c112 = arith.constant 112 : index
    %c0_18 = arith.constant 0 : index
    %38 = vector.load %arg1[%c112, %c0_18] : memref<408x64xf32, #tpu.memory_space<vmem>>, vector<8x32xf32>
    %cst_19 = arith.constant dense<0.000000e+00> : vector<32x32xf32>
    %39 = tpu.matmul %37, %38, %cst_19 {dimension_numbers = #tpu.dot_dimension_numbers<[1], [0], [0], [1], [0, 0, 1, 1], [], []>} : vector<32x8xf32>, vector<8x32xf32>, vector<32x32xf32> -> vector<32x32xf32>
    %40 = arith.addf %32, %39 : vector<32x32xf32>
    %c120 = arith.constant 120 : index
    %c0_20 = arith.constant 0 : index
    %41 = vector.load %arg1[%c120, %c0_20] : memref<408x64xf32, #tpu.memory_space<vmem>>, vector<1x32xf32>
    %42 = vector.broadcast %41 : vector<1x32xf32> to vector<32x32xf32>
    %43 = arith.addf %40, %42 : vector<32x32xf32>
    %c352 = arith.constant 352 : index
    %c0_21 = arith.constant 0 : index
    %44 = vector.load %arg1[%c352, %c0_21] : memref<408x64xf32, #tpu.memory_space<vmem>>, vector<24x4xf32>
    %cst_22 = arith.constant dense<0.000000e+00> : vector<24x32xf32>
    %45 = tpu.matmul %44, %18, %cst_22 {dimension_numbers = #tpu.dot_dimension_numbers<[1], [0], [0], [1], [0, 0, 1, 1], [], []>} : vector<24x4xf32>, vector<4x32xf32>, vector<24x32xf32> -> vector<24x32xf32>
    %46 = vector.extract_strided_slice %45 {offsets = [0, 0], sizes = [8, 32], strides = [1, 1]} : vector<24x32xf32> to vector<8x32xf32>
    %47 = vector.extract_strided_slice %45 {offsets = [8, 0], sizes = [8, 32], strides = [1, 1]} : vector<24x32xf32> to vector<8x32xf32>
    %48 = vector.extract_strided_slice %45 {offsets = [16, 0], sizes = [8, 32], strides = [1, 1]} : vector<24x32xf32> to vector<8x32xf32>
    %49 = arith.mulf %47, %48 : vector<8x32xf32>
    %50 = arith.addf %48, %49 : vector<8x32xf32>
    %c128_23 = arith.constant 128 : index
    %c0_24 = arith.constant 0 : index
    %51 = vector.load %arg1[%c128_23, %c0_24] : memref<408x64xf32, #tpu.memory_space<vmem>>, vector<1x32xf32>
    %52 = vector.broadcast %51 : vector<1x32xf32> to vector<8x32xf32>
    %53 = arith.addf %50, %52 : vector<8x32xf32>
    %54 = tpu.concatenate %43, %53 in 0 : vector<32x32xf32>, vector<8x32xf32> -> vector<40x32xf32>
    %c168 = arith.constant 168 : index
    %c0_25 = arith.constant 0 : index
    %55 = vector.load %arg1[%c168, %c0_25] : memref<408x64xf32, #tpu.memory_space<vmem>>, vector<32x64xf32>
    %cst_26 = arith.constant dense<0.000000e+00> : vector<40x64xf32>
    %56 = tpu.matmul %54, %55, %cst_26 {dimension_numbers = #tpu.dot_dimension_numbers<[1], [0], [0], [1], [0, 0, 1, 1], [], []>} : vector<40x32xf32>, vector<32x64xf32>, vector<40x64xf32> -> vector<40x64xf32>
    %c136 = arith.constant 136 : index
    %c0_27 = arith.constant 0 : index
    %57 = vector.load %arg1[%c136, %c0_27] : memref<408x64xf32, #tpu.memory_space<vmem>>, vector<32x64xf32>
    %cst_28 = arith.constant dense<0.000000e+00> : vector<8x64xf32>
    %58 = tpu.matmul %46, %57, %cst_28 {dimension_numbers = #tpu.dot_dimension_numbers<[1], [0], [0], [1], [0, 0, 1, 1], [], []>} : vector<8x32xf32>, vector<32x64xf32>, vector<8x64xf32> -> vector<8x64xf32>
    %c376 = arith.constant 376 : index
    %c0_29 = arith.constant 0 : index
    %59 = vector.load %arg1[%c376, %c0_29] : memref<408x64xf32, #tpu.memory_space<vmem>>, vector<8x64xf32>
    %60 = arith.mulf %58, %59 : vector<8x64xf32>
    %cst_30 = arith.constant dense<0.000000e+00> : vector<8x40xf32>
    %61 = tpu.matmul %60, %56, %cst_30 {dimension_numbers = #tpu.dot_dimension_numbers<[1], [1], [0], [0], [0, 0, 1, 0], [], []>} : vector<8x64xf32>, vector<40x64xf32>, vector<8x40xf32> -> vector<8x40xf32>
    %c400 = arith.constant 400 : index
    %c0_31 = arith.constant 0 : index
    %62 = vector.load %arg1[%c400, %c0_31] : memref<408x64xf32, #tpu.memory_space<vmem>>, vector<8x40xf32>
    %63 = arith.addf %61, %62 : vector<8x40xf32>
    %c136_32 = arith.constant 136 : index
    %c0_33 = arith.constant 0 : index
    %64 = vector.load %arg0[%c136_32, %c0_33] : memref<144x64xi32, #tpu.memory_space<vmem>>, vector<1x40xi32>
    %c1_i32 = arith.constant 1 : i32
    %65 = vector.broadcast %c1_i32 : i32 to vector<1x40xi32>
    %66 = arith.cmpi ne, %64, %65 : vector<1x40xi32>
    %cst_34 = arith.constant -1.000000e+30 : f32
    %67 = vector.shape_cast %66 : vector<1x40xi1> to vector<1x40xi1>
    %68 = vector.broadcast %67 : vector<1x40xi1> to vector<8x40xi1>
    %69 = vector.broadcast %cst_34 : f32 to vector<8x40xf32>
    %70 = arith.select %68, %63, %69 : vector<8x40xi1>, vector<8x40xf32>
    %cst_35 = arith.constant dense<0xFF800000> : vector<8xf32>
    %71 = vector.multi_reduction <maximumf>, %70, %cst_35 [1] : vector<8x40xf32> to vector<8xf32>
    %72 = vector.shape_cast %71 : vector<8xf32> to vector<8x1xf32>
    %73 = vector.broadcast %72 : vector<8x1xf32> to vector<8x40xf32>
    %74 = arith.subf %70, %73 : vector<8x40xf32>
    %75 = math.exp %74 : vector<8x40xf32>
    %cst_36 = arith.constant dense<0.000000e+00> : vector<8xf32>
    %76 = vector.multi_reduction <add>, %75, %cst_36 [1] : vector<8x40xf32> to vector<8xf32>
    %77 = vector.shape_cast %76 : vector<8xf32> to vector<8x1xf32>
    %78 = tpu.reciprocal %77 {approx = true} : vector<8x1xf32> -> vector<8x1xf32>
    %79 = vector.broadcast %78 : vector<8x1xf32> to vector<8x40xf32>
    %80 = arith.mulf %75, %79 : vector<8x40xf32>
    %81 = vector.extract_strided_slice %56 {offsets = [0, 0], sizes = [40, 32], strides = [1, 1]} : vector<40x64xf32> to vector<40x32xf32>
    %cst_37 = arith.constant dense<0.000000e+00> : vector<8x32xf32>
    %82 = tpu.matmul %80, %81, %cst_37 {dimension_numbers = #tpu.dot_dimension_numbers<[1], [0], [0], [1], [0, 0, 1, 1], [], []>} : vector<8x40xf32>, vector<40x32xf32>, vector<8x32xf32> -> vector<8x32xf32>
    %c392 = arith.constant 392 : index
    %c0_38 = arith.constant 0 : index
    %83 = vector.load %arg1[%c392, %c0_38] : memref<408x64xf32, #tpu.memory_space<vmem>>, vector<4x8xf32>
    %c384 = arith.constant 384 : index
    %c0_39 = arith.constant 0 : index
    %84 = vector.load %arg1[%c384, %c0_39] : memref<408x64xf32, #tpu.memory_space<vmem>>, vector<8x32xf32>
    %85 = arith.mulf %82, %84 : vector<8x32xf32>
    %cst_40 = arith.constant dense<0.000000e+00> : vector<4x32xf32>
    %86 = tpu.matmul %83, %85, %cst_40 {dimension_numbers = #tpu.dot_dimension_numbers<[1], [0], [0], [1], [0, 0, 1, 1], [], []>} : vector<4x8xf32>, vector<8x32xf32>, vector<4x32xf32> -> vector<4x32xf32>
    %c320 = arith.constant 320 : index
    %c0_41 = arith.constant 0 : index
    %87 = vector.load %arg1[%c320, %c0_41] : memref<408x64xf32, #tpu.memory_space<vmem>>, vector<1x32xf32>
    %88 = vector.broadcast %87 : vector<1x32xf32> to vector<4x32xf32>
    %89 = arith.mulf %86, %88 : vector<4x32xf32>
    %c328 = arith.constant 328 : index
    %c0_42 = arith.constant 0 : index
    %90 = vector.load %arg1[%c328, %c0_42] : memref<408x64xf32, #tpu.memory_space<vmem>>, vector<1x32xf32>
    %91 = vector.broadcast %90 : vector<1x32xf32> to vector<4x32xf32>
    %92 = arith.mulf %26, %91 : vector<4x32xf32>
    %93 = arith.addf %89, %92 : vector<4x32xf32>
    %c200 = arith.constant 200 : index
    %c0_43 = arith.constant 0 : index
    %94 = vector.load %arg1[%c200, %c0_43] : memref<408x64xf32, #tpu.memory_space<vmem>>, vector<32x32xf32>
    %cst_44 = arith.constant dense<0.000000e+00> : vector<4x32xf32>
    %95 = tpu.matmul %93, %94, %cst_44 {dimension_numbers = #tpu.dot_dimension_numbers<[1], [0], [0], [1], [0, 0, 1, 1], [], []>} : vector<4x32xf32>, vector<32x32xf32>, vector<4x32xf32> -> vector<4x32xf32>
    %c232 = arith.constant 232 : index
    %c0_45 = arith.constant 0 : index
    %96 = vector.load %arg1[%c232, %c0_45] : memref<408x64xf32, #tpu.memory_space<vmem>>, vector<1x32xf32>
    %97 = vector.broadcast %96 : vector<1x32xf32> to vector<4x32xf32>
    %98 = arith.addf %95, %97 : vector<4x32xf32>
    %cst_46 = arith.constant 0.000000e+00 : f32
    %99 = vector.broadcast %cst_46 : f32 to vector<4x32xf32>
    %100 = arith.maximumf %98, %99 : vector<4x32xf32>
    %c240 = arith.constant 240 : index
    %c0_47 = arith.constant 0 : index
    %101 = vector.load %arg1[%c240, %c0_47] : memref<408x64xf32, #tpu.memory_space<vmem>>, vector<32x32xf32>
    %cst_48 = arith.constant dense<0.000000e+00> : vector<4x32xf32>
    %102 = tpu.matmul %100, %101, %cst_48 {dimension_numbers = #tpu.dot_dimension_numbers<[1], [0], [0], [1], [0, 0, 1, 1], [], []>} : vector<4x32xf32>, vector<32x32xf32>, vector<4x32xf32> -> vector<4x32xf32>
    %c272 = arith.constant 272 : index
    %c0_49 = arith.constant 0 : index
    %103 = vector.load %arg1[%c272, %c0_49] : memref<408x64xf32, #tpu.memory_space<vmem>>, vector<1x32xf32>
    %104 = vector.broadcast %103 : vector<1x32xf32> to vector<4x32xf32>
    %105 = arith.addf %102, %104 : vector<4x32xf32>
    %cst_50 = arith.constant 0.000000e+00 : f32
    %106 = vector.broadcast %cst_50 : f32 to vector<4x32xf32>
    %107 = arith.maximumf %105, %106 : vector<4x32xf32>
    %c280 = arith.constant 280 : index
    %c0_51 = arith.constant 0 : index
    %108 = vector.load %arg1[%c280, %c0_51] : memref<408x64xf32, #tpu.memory_space<vmem>>, vector<32x3xf32>
    %cst_52 = arith.constant dense<0.000000e+00> : vector<4x3xf32>
    %109 = tpu.matmul %107, %108, %cst_52 {dimension_numbers = #tpu.dot_dimension_numbers<[1], [0], [0], [1], [0, 0, 1, 1], [], []>} : vector<4x32xf32>, vector<32x3xf32>, vector<4x3xf32> -> vector<4x3xf32>
    %c312 = arith.constant 312 : index
    %c0_53 = arith.constant 0 : index
    %110 = vector.load %arg1[%c312, %c0_53] : memref<408x64xf32, #tpu.memory_space<vmem>>, vector<1x3xf32>
    %111 = vector.broadcast %110 : vector<1x3xf32> to vector<4x3xf32>
    %112 = arith.addf %109, %111 : vector<4x3xf32>
    %c0_54 = arith.constant 0 : index
    %c0_55 = arith.constant 0 : index
    %113 = vector.load %arg2[%c0_54, %c0_55] : memref<4x3xf32, #tpu.memory_space<vmem>>, vector<4x3xf32>
    tpu.vector_store %arg2[%c0_54, %c0_55], %112 {strides = array<i32>} : memref<4x3xf32, #tpu.memory_space<vmem>>, vector<4x3xf32>,
    return
  }
}

</mosaic_0001>

<llo_original>
// kernel: rel_overall_forward.1
$region0: #{rel_overall_forward.1}
  #allocation0 [shape = 'u32[]', space=smem, size = 0x4, offset = 0x4, fixed_abs, tag = 'smem constant byte address 0x4 - core index']
  #allocation1 [shape = 'u32[144,128]{1,0:T(1,128)}', space=vmem, size = 0x12000, scoped, tag = 'internal scratch']
  %s0 = inlined_call_operand.vmem [shape: s32[144,64], index: 0, kind: input, shape index: {}]
  %s1 = inlined_call_operand.vmem [shape: f32[408,64], index: 1, kind: input, shape index: {}]
  %s2 = inlined_call_operand.hbm [shape: f32[4,3], index: 2, kind: output, shape index: {}]
  %s3 = sld [smem:[#allocation0]]
  $region18: #{rel_overall_forward.1} parent=0
    _
  %s5 = ssub.s32 1, %s3
  %s6 = scalar_select 0, %s5, %s3
  $region1: #{rel_overall_forward.1} parent=0
    #allocation2 [shape = 'u8[2048]{0}', space=vmem, size = 0x800, scoped, tag = 'output window, operand 0, single buffered']
    #allocation3 [shape = 's32[1]{0}', space=sflag, size = 0x4, scoped, tag = 'scoped memory for rel_overall_forward.1']
    %7 = vsyncpa [#allocation3], 0
    // Predicated region
    $region2: #{rel_overall_forward.1} parent=1 // pred_check
      _
    $region3: #{rel_overall_forward.1} parent=1 // pred_check_branch
      %9 = sbr.rel (0) target = $region5
    $region4: #{rel_overall_forward.1} parent=1 // pred_region
      _
    $region5: #{rel_overall_forward.1} parent=1 // pred_fallthru
      _
    // Predicated region
    $region6: #{rel_overall_forward.1} parent=1 // pred_check
      _
    $region7: #{rel_overall_forward.1} parent=1 // pred_check_branch
      %11 = sbr.rel (0) target = $region9
    $region8: #{rel_overall_forward.1} parent=1 // pred_region
      _
    $region9: #{rel_overall_forward.1} parent=1 // pred_fallthru
      _
    %v12 = vld [vmem:[%s0] sm:$0xff]
    %v13 = vld [vmem:[%s0 + $0x8] sm:$0xff]
    %v14 = vld [vmem:[%s0 + $0x10] sm:$0xff]
    %v15 = vld [vmem:[%s0 + $0x18] sm:$0xff]
    %v16 = vld [vmem:[%s0 + $0x20] sm:$0xff]
    %v17 = vld [vmem:[%s0 + $0x28] sm:$0xff]
    %v18 = vld [vmem:[%s0 + $0x30] sm:$0xff]
    %v19 = vld [vmem:[%s0 + $0x38] sm:$0xff]
    %v20 = vlaneseq
    %v21 = vand.u32 %v20, 127
    %vm22 = vcmp.eq.s32.totalorder %v12, %v21
    %vm23 = vcmp.eq.s32.totalorder %v13, %v21
    %vm24 = vcmp.eq.s32.totalorder %v14, %v21
    %vm25 = vcmp.eq.s32.totalorder %v15, %v21
    %vm26 = vcmp.eq.s32.totalorder %v16, %v21
    %vm27 = vcmp.eq.s32.totalorder %v17, %v21
    %vm28 = vcmp.eq.s32.totalorder %v18, %v21
    %vm29 = vcmp.eq.s32.totalorder %v19, %v21
    %v30 = vsel %vm22, 1, 0
    %v31 = vsel %vm23, 1, 0
    %v32 = vsel %vm24, 1, 0
    %v33 = vsel %vm25, 1, 0
    %v34 = vsel %vm26, 1, 0
    %v35 = vsel %vm27, 1, 0
    %v36 = vsel %vm28, 1, 0
    %v37 = vsel %vm29, 1, 0
    %v38 = vcvt.s32.f32 %v30
    %v39 = vcvt.s32.f32 %v31
    %v40 = vcvt.s32.f32 %v32
    %v41 = vcvt.s32.f32 %v33
    %v42 = vcvt.s32.f32 %v34
    %v43 = vcvt.s32.f32 %v35
    %v44 = vcvt.s32.f32 %v36
    %v45 = vcvt.s32.f32 %v37
    %v46 = vld [vmem:[%s1] sm:$0xff]
    %v47 = vld [vmem:[%s1 + $0x8] sm:$0xff]
    %v48 = vld [vmem:[%s1 + $0x10] sm:$0xff]
    %v49 = vld [vmem:[%s1 + $0x18] sm:$0xff]
    %vm50 = vcmask 261120
    %v52 = vsel %vm50, %v38, 0
    %v55 = vsel %vm50, %v39, 0
    %v58 = vsel %vm50, %v40, 0
    %v61 = vsel %vm50, %v41, 0
    %v64 = vsel %vm50, %v42, 0
    %v67 = vsel %vm50, %v43, 0
    %v70 = vsel %vm50, %v44, 0
    %v73 = vsel %vm50, %v45, 0
    %75 = vmatprep.subr.mxu0 0.0
    %76 = vmatpush1.msra.mxu0 %v46
    %77 = vmatprep.subr.mxu0 0.0
    %78 = vmatpush1.msra.mxu0 %v47
    %79 = vmatprep.subr.mxu0 0.0
    %80 = vmatpush1.msra.mxu0 %v48
    %81 = vmatprep.subr.mxu0 0.0
    %82 = vmatpush1.msra.mxu0 %v49
    %83 = vmatprep.subr.mxu0 0.0
    %84 = vmatpush1.msra.mxu0 0.0
    %85 = vmatprep.subr.mxu0 0.0
    %86 = vmatpush1.msra.mxu0 0.0
    %87 = vmatprep.subr.mxu0 0.0
    %88 = vmatpush1.msra.mxu0 0.0
    %89 = vmatprep.subr.mxu0 0.0
    %90 = vmatpush1.msra.mxu0 0.0
    %91 = vmatprep.subr.mxu0 0.0
    %92 = vmatpush1.msra.mxu0 0.0
    %93 = vmatprep.subr.mxu0 0.0
    %94 = vmatpush1.msra.mxu0 0.0
    %95 = vmatprep.subr.mxu0 0.0
    %96 = vmatpush1.msra.mxu0 0.0
    %97 = vmatprep.subr.mxu0 0.0
    %98 = vmatpush1.msra.mxu0 0.0
    %99 = vmatprep.subr.mxu0 0.0
    %100 = vmatpush1.msra.mxu0 0.0
    %101 = vmatprep.subr.mxu0 0.0
    %102 = vmatpush1.msra.mxu0 0.0
    %103 = vmatprep.subr.mxu0 0.0
    %104 = vmatpush1.msra.mxu0 0.0
    %105 = vmatprep.subr.mxu0 0.0
    %106 = vmatpush1.msra.mxu0 0.0
    %107 = vmatprep.subr.mxu0 0.0
    %108 = vmatpush1.msra.mxu0 0.0
    %109 = vmatprep.subr.mxu0 0.0
    %110 = vmatpush1.msra.mxu0 0.0
    %111 = vmatprep.subr.mxu0 0.0
    %112 = vmatpush1.msra.mxu0 0.0
    %113 = vmatprep.subr.mxu0 0.0
    %114 = vmatpush1.msra.mxu0 0.0
    %115 = vmatprep.subr.mxu0 0.0
    %116 = vmatpush1.msra.mxu0 0.0
    %117 = vmatprep.subr.mxu0 0.0
    %118 = vmatpush1.msra.mxu0 0.0
    %119 = vmatprep.subr.mxu0 0.0
    %120 = vmatpush1.msra.mxu0 0.0
    %121 = vmatprep.subr.mxu0 0.0
    %122 = vmatpush1.msra.mxu0 0.0
    %123 = vmatprep.subr.mxu0 0.0
    %124 = vmatpush1.msra.mxu0 0.0
    %125 = vmatprep.subr.mxu0 0.0
    %126 = vmatpush1.msra.mxu0 0.0
    %127 = vmatprep.subr.mxu0 0.0
    %128 = vmatpush1.msra.mxu0 0.0
    %129 = vmatprep.subr.mxu0 0.0
    %130 = vmatpush1.msra.mxu0 0.0
    %131 = vmatprep.subr.mxu0 0.0
    %132 = vmatpush1.msra.mxu0 0.0
    %133 = vmatprep.subr.mxu0 0.0
    %134 = vmatpush1.msra.mxu0 0.0
    %135 = vmatprep.subr.mxu0 0.0
    %136 = vmatpush1.msra.mxu0 0.0
    %137 = vmatprep.subr.mxu0 0.0
    %138 = vmatpush1.msra.mxu0 0.0
    %139 = vmatprep.mubr.f32.mxu0 0.0
    %140 = vmatmul.mubr.f32.gmra.mrb[0].mxu0 %v52
    %v141 = vpop.f32.mrb[0].mxu0
    %v142 = vadd.f32 0.0, %v141
    %v143 = vpop.f32.mrb[0].mxu0
    %144 = vmatprep.mubr.f32.mxu0 0.0
    %145 = vmatmul.mubr.f32.gmra.mrb[0].mxu0 %v55
    %v146 = vpop.f32.mrb[0].mxu0
    %v147 = vadd.f32 0.0, %v146
    %v148 = vpop.f32.mrb[0].mxu0
    %149 = vmatprep.mubr.f32.mxu0 0.0
    %150 = vmatmul.mubr.f32.gmra.mrb[0].mxu0 %v58
    %v151 = vpop.f32.mrb[0].mxu0
    %v152 = vadd.f32 0.0, %v151
    %v153 = vpop.f32.mrb[0].mxu0
    %154 = vmatprep.mubr.f32.mxu0 0.0
    %155 = vmatmul.mubr.f32.gmra.mrb[0].mxu0 %v61
    %v156 = vpop.f32.mrb[0].mxu0
    %v157 = vadd.f32 0.0, %v156
    %v158 = vpop.f32.mrb[0].mxu0
    %159 = vmatprep.mubr.f32.mxu0 0.0
    %160 = vmatmul.mubr.f32.gmra.mrb[0].mxu0 %v64
    %v161 = vpop.f32.mrb[0].mxu0
    %v162 = vadd.f32 0.0, %v161
    %v163 = vpop.f32.mrb[0].mxu0
    %164 = vmatprep.mubr.f32.mxu0 0.0
    %165 = vmatmul.mubr.f32.gmra.mrb[0].mxu0 %v67
    %v166 = vpop.f32.mrb[0].mxu0
    %v167 = vadd.f32 0.0, %v166
    %v168 = vpop.f32.mrb[0].mxu0
    %169 = vmatprep.mubr.f32.mxu0 0.0
    %170 = vmatmul.mubr.f32.gmra.mrb[0].mxu0 %v70
    %v171 = vpop.f32.mrb[0].mxu0
    %v172 = vadd.f32 0.0, %v171
    %v173 = vpop.f32.mrb[0].mxu0
    %174 = vmatprep.mubr.f32.mxu0 0.0
    %175 = vmatmul.mubr.f32.gmra.mrb[0].mxu0 %v73
    %v176 = vpop.f32.mrb[0].mxu0
    %v177 = vadd.f32 0.0, %v176
    %v178 = vpop.f32.mrb[0].mxu0
    %179 = vdwg.mxu0
    %v180 = vld [vmem:[%s1 + $0x20] sm:$0xff]
    %v181 = vld [vmem:[%s1 + $0x28] sm:$0xff]
    %v182 = vld [vmem:[%s1 + $0x30] sm:$0xff]
    %v183 = vld [vmem:[%s1 + $0x38] sm:$0xff]
    %v184 = vld [vmem:[%s1 + $0x40] sm:$0x1]
    %v185 = vlaneseq
    %v186 = vshrl.u32 %v185, 7
    %v187 = vsub.s32 0, %v186
    %v188 = vrot.slane %v184, %v187
    %v190 = vsel %vm50, %v142, 0
    %v193 = vsel %vm50, %v147, 0
    %v196 = vsel %vm50, %v152, 0
    %v199 = vsel %vm50, %v157, 0
    %v202 = vsel %vm50, %v162, 0
    %v205 = vsel %vm50, %v167, 0
    %v208 = vsel %vm50, %v172, 0
    %v211 = vsel %vm50, %v177, 0
    %213 = vmatprep.subr.mxu0 0.0
    %214 = vmatpush1.msra.mxu0 %v180
    %215 = vmatprep.subr.mxu0 0.0
    %216 = vmatpush1.msra.mxu0 %v181
    %217 = vmatprep.subr.mxu0 0.0
    %218 = vmatpush1.msra.mxu0 %v182
    %219 = vmatprep.subr.mxu0 0.0
    %220 = vmatpush1.msra.mxu0 %v183
    %221 = vmatprep.subr.mxu0 0.0
    %222 = vmatpush1.msra.mxu0 0.0
    %223 = vmatprep.subr.mxu0 0.0
    %224 = vmatpush1.msra.mxu0 0.0
    %225 = vmatprep.subr.mxu0 0.0
    %226 = vmatpush1.msra.mxu0 0.0
    %227 = vmatprep.subr.mxu0 0.0
    %228 = vmatpush1.msra.mxu0 0.0
    %229 = vmatprep.subr.mxu0 0.0
    %230 = vmatpush1.msra.mxu0 0.0
    %231 = vmatprep.subr.mxu0 0.0
    %232 = vmatpush1.msra.mxu0 0.0
    %233 = vmatprep.subr.mxu0 0.0
    %234 = vmatpush1.msra.mxu0 0.0
    %235 = vmatprep.subr.mxu0 0.0
    %236 = vmatpush1.msra.mxu0 0.0
    %237 = vmatprep.subr.mxu0 0.0
    %238 = vmatpush1.msra.mxu0 0.0
    %239 = vmatprep.subr.mxu0 0.0
    %240 = vmatpush1.msra.mxu0 0.0
    %241 = vmatprep.subr.mxu0 0.0
    %242 = vmatpush1.msra.mxu0 0.0
    %243 = vmatprep.subr.mxu0 0.0
    %244 = vmatpush1.msra.mxu0 0.0
    %245 = vmatprep.subr.mxu0 0.0
    %246 = vmatpush1.msra.mxu0 0.0
    %247 = vmatprep.subr.mxu0 0.0
    %248 = vmatpush1.msra.mxu0 0.0
    %249 = vmatprep.subr.mxu0 0.0
    %250 = vmatpush1.msra.mxu0 0.0
    %251 = vmatprep.subr.mxu0 0.0
    %252 = vmatpush1.msra.mxu0 0.0
    %253 = vmatprep.subr.mxu0 0.0
    %254 = vmatpush1.msra.mxu0 0.0
    %255 = vmatprep.subr.mxu0 0.0
    %256 = vmatpush1.msra.mxu0 0.0
    %257 = vmatprep.subr.mxu0 0.0
    %258 = vmatpush1.msra.mxu0 0.0
    %259 = vmatprep.subr.mxu0 0.0
    %260 = vmatpush1.msra.mxu0 0.0
    %261 = vmatprep.subr.mxu0 0.0
    %262 = vmatpush1.msra.mxu0 0.0
    %263 = vmatprep.subr.mxu0 0.0
    %264 = vmatpush1.msra.mxu0 0.0
    %265 = vmatprep.subr.mxu0 0.0
    %266 = vmatpush1.msra.mxu0 0.0
    %267 = vmatprep.subr.mxu0 0.0
    %268 = vmatpush1.msra.mxu0 0.0
    %269 = vmatprep.subr.mxu0 0.0
    %270 = vmatpush1.msra.mxu0 0.0
    %271 = vmatprep.subr.mxu0 0.0
    %272 = vmatpush1.msra.mxu0 0.0
    %273 = vmatprep.subr.mxu0 0.0
    %274 = vmatpush1.msra.mxu0 0.0
    %275 = vmatprep.subr.mxu0 0.0
    %276 = vmatpush1.msra.mxu0 0.0
    %277 = vmatprep.mubr.f32.mxu0 0.0
    %278 = vmatmul.mubr.f32.gmra.mrb[0].mxu0 %v190
    %v279 = vpop.f32.mrb[0].mxu0
    %v280 = vadd.f32 %v188, %v279
    %v281 = vpop.f32.mrb[0].mxu0
    %282 = vmatprep.mubr.f32.mxu0 0.0
    %283 = vmatmul.mubr.f32.gmra.mrb[0].mxu0 %v193
    %v284 = vpop.f32.mrb[0].mxu0
    %v285 = vadd.f32 %v188, %v284
    %v286 = vpop.f32.mrb[0].mxu0
    %287 = vmatprep.mubr.f32.mxu0 0.0
    %288 = vmatmul.mubr.f32.gmra.mrb[0].mxu0 %v196
    %v289 = vpop.f32.mrb[0].mxu0
    %v290 = vadd.f32 %v188, %v289
    %v291 = vpop.f32.mrb[0].mxu0
    %292 = vmatprep.mubr.f32.mxu0 0.0
    %293 = vmatmul.mubr.f32.gmra.mrb[0].mxu0 %v199
    %v294 = vpop.f32.mrb[0].mxu0
    %v295 = vadd.f32 %v188, %v294
    %v296 = vpop.f32.mrb[0].mxu0
    %297 = vmatprep.mubr.f32.mxu0 0.0
    %298 = vmatmul.mubr.f32.gmra.mrb[0].mxu0 %v202
    %v299 = vpop.f32.mrb[0].mxu0
    %v300 = vadd.f32 %v188, %v299
    %v301 = vpop.f32.mrb[0].mxu0
    %302 = vmatprep.mubr.f32.mxu0 0.0
    %303 = vmatmul.mubr.f32.gmra.mrb[0].mxu0 %v205
    %v304 = vpop.f32.mrb[0].mxu0
    %v305 = vadd.f32 %v188, %v304
    %v306 = vpop.f32.mrb[0].mxu0
    %307 = vmatprep.mubr.f32.mxu0 0.0
    %308 = vmatmul.mubr.f32.gmra.mrb[0].mxu0 %v208
    %v309 = vpop.f32.mrb[0].mxu0
    %v310 = vadd.f32 %v188, %v309
    %v311 = vpop.f32.mrb[0].mxu0
    %312 = vmatprep.mubr.f32.mxu0 0.0
    %313 = vmatmul.mubr.f32.gmra.mrb[0].mxu0 %v211
    %v314 = vpop.f32.mrb[0].mxu0
    %v315 = vadd.f32 %v188, %v314
    %v316 = vpop.f32.mrb[0].mxu0
    %317 = vdwg.mxu0
    %v318 = vtanh.pop %v280
    %v319 = vtanh.pop %v285
    %v320 = vtanh.pop %v290
    %v321 = vtanh.pop %v295
    %v322 = vtanh.pop %v300
    %v323 = vtanh.pop %v305
    %v324 = vtanh.pop %v310
    %v325 = vtanh.pop %v315
    %v326 = vld [vmem:[%s0 + $0x80] sm:$0x1]
    %v327 = vcvt.s32.f32 %v326
    %v328 = vld [vmem:[%s1 + $0x150] sm:$0xf]
    %v329 = vlaneseq
    %v330 = vshrl.u32 %v329, 7
    %v331 = vsub.s32 0, %v330
    %v332 = vrot.slane %v327, %v331
    %v333 = vmul.f32 %v328, %v332
    %vm334 = vcmask 523264
    %v336 = vsel %vm334, %v333, 0
    %338 = vmatprep.subr.mxu0 0.0
    %339 = vmatpush1.msra.mxu0 %v318
    %340 = vmatprep.subr.mxu0 0.0
    %341 = vmatpush1.msra.mxu0 %v319
    %342 = vmatprep.subr.mxu0 0.0
    %343 = vmatpush1.msra.mxu0 %v320
    %344 = vmatprep.subr.mxu0 0.0
    %345 = vmatpush1.msra.mxu0 %v321
    %346 = vmatprep.subr.mxu0 0.0
    %347 = vmatpush1.msra.mxu0 %v322
    %348 = vmatprep.subr.mxu0 0.0
    %349 = vmatpush1.msra.mxu0 %v323
    %350 = vmatprep.subr.mxu0 0.0
    %351 = vmatpush1.msra.mxu0 %v324
    %352 = vmatprep.subr.mxu0 0.0
    %353 = vmatpush1.msra.mxu0 %v325
    %354 = vmatprep.subr.mxu0 0.0
    %355 = vmatpush1.msra.mxu0 0.0
    %356 = vmatprep.subr.mxu0 0.0
    %357 = vmatpush1.msra.mxu0 0.0
    %358 = vmatprep.subr.mxu0 0.0
    %359 = vmatpush1.msra.mxu0 0.0
    %360 = vmatprep.subr.mxu0 0.0
    %361 = vmatpush1.msra.mxu0 0.0
    %362 = vmatprep.subr.mxu0 0.0
    %363 = vmatpush1.msra.mxu0 0.0
    %364 = vmatprep.subr.mxu0 0.0
    %365 = vmatpush1.msra.mxu0 0.0
    %366 = vmatprep.subr.mxu0 0.0
    %367 = vmatpush1.msra.mxu0 0.0
    %368 = vmatprep.subr.mxu0 0.0
    %369 = vmatpush1.msra.mxu0 0.0
    %370 = vmatprep.subr.mxu0 0.0
    %371 = vmatpush1.msra.mxu0 0.0
    %372 = vmatprep.subr.mxu0 0.0
    %373 = vmatpush1.msra.mxu0 0.0
    %374 = vmatprep.subr.mxu0 0.0
    %375 = vmatpush1.msra.mxu0 0.0
    %376 = vmatprep.subr.mxu0 0.0
    %377 = vmatpush1.msra.mxu0 0.0
    %378 = vmatprep.subr.mxu0 0.0
    %379 = vmatpush1.msra.mxu0 0.0
    %380 = vmatprep.subr.mxu0 0.0
    %381 = vmatpush1.msra.mxu0 0.0
    %382 = vmatprep.subr.mxu0 0.0
    %383 = vmatpush1.msra.mxu0 0.0
    %384 = vmatprep.subr.mxu0 0.0
    %385 = vmatpush1.msra.mxu0 0.0
    %386 = vmatprep.subr.mxu0 0.0
    %387 = vmatpush1.msra.mxu0 0.0
    %388 = vmatprep.subr.mxu0 0.0
    %389 = vmatpush1.msra.mxu0 0.0
    %390 = vmatprep.subr.mxu0 0.0
    %391 = vmatpush1.msra.mxu0 0.0
    %392 = vmatprep.subr.mxu0 0.0
    %393 = vmatpush1.msra.mxu0 0.0
    %394 = vmatprep.subr.mxu0 0.0
    %395 = vmatpush1.msra.mxu0 0.0
    %396 = vmatprep.subr.mxu0 0.0
    %397 = vmatpush1.msra.mxu0 0.0
    %398 = vmatprep.subr.mxu0 0.0
    %399 = vmatpush1.msra.mxu0 0.0
    %400 = vmatprep.subr.mxu0 0.0
    %401 = vmatpush1.msra.mxu0 0.0
    %402 = vmatprep.mubr.f32.mxu0 0.0
    %403 = vmatmul.mubr.f32.gmra.mrb[0].mxu0 %v336
    %v404 = vpop.f32.mrb[0].mxu0
    %v405 = vadd.f32 0.0, %v404
    %v406 = vpop.f32.mrb[0].mxu0
    %407 = vdwg.mxu0
    %v408 = vld [vmem:[%s1 + $0x158] sm:$0xf]
    %v410 = vsel %vm334, %v408, 0
    %412 = vmatprep.subr.mxu0 0.0
    %413 = vmatpush1.msra.mxu0 %v318
    %414 = vmatprep.subr.mxu0 0.0
    %415 = vmatpush1.msra.mxu0 %v319
    %416 = vmatprep.subr.mxu0 0.0
    %417 = vmatpush1.msra.mxu0 %v320
    %418 = vmatprep.subr.mxu0 0.0
    %419 = vmatpush1.msra.mxu0 %v321
    %420 = vmatprep.subr.mxu0 0.0
    %421 = vmatpush1.msra.mxu0 %v322
    %422 = vmatprep.subr.mxu0 0.0
    %423 = vmatpush1.msra.mxu0 %v323
    %424 = vmatprep.subr.mxu0 0.0
    %425 = vmatpush1.msra.mxu0 %v324
    %426 = vmatprep.subr.mxu0 0.0
    %427 = vmatpush1.msra.mxu0 %v325
    %428 = vmatprep.subr.mxu0 0.0
    %429 = vmatpush1.msra.mxu0 0.0
    %430 = vmatprep.subr.mxu0 0.0
    %431 = vmatpush1.msra.mxu0 0.0
    %432 = vmatprep.subr.mxu0 0.0
    %433 = vmatpush1.msra.mxu0 0.0
    %434 = vmatprep.subr.mxu0 0.0
    %435 = vmatpush1.msra.mxu0 0.0
    %436 = vmatprep.subr.mxu0 0.0
    %437 = vmatpush1.msra.mxu0 0.0
    %438 = vmatprep.subr.mxu0 0.0
    %439 = vmatpush1.msra.mxu0 0.0
    %440 = vmatprep.subr.mxu0 0.0
    %441 = vmatpush1.msra.mxu0 0.0
    %442 = vmatprep.subr.mxu0 0.0
    %443 = vmatpush1.msra.mxu0 0.0
    %444 = vmatprep.subr.mxu0 0.0
    %445 = vmatpush1.msra.mxu0 0.0
    %446 = vmatprep.subr.mxu0 0.0
    %447 = vmatpush1.msra.mxu0 0.0
    %448 = vmatprep.subr.mxu0 0.0
    %449 = vmatpush1.msra.mxu0 0.0
    %450 = vmatprep.subr.mxu0 0.0
    %451 = vmatpush1.msra.mxu0 0.0
    %452 = vmatprep.subr.mxu0 0.0
    %453 = vmatpush1.msra.mxu0 0.0
    %454 = vmatprep.subr.mxu0 0.0
    %455 = vmatpush1.msra.mxu0 0.0
    %456 = vmatprep.subr.mxu0 0.0
    %457 = vmatpush1.msra.mxu0 0.0
    %458 = vmatprep.subr.mxu0 0.0
    %459 = vmatpush1.msra.mxu0 0.0
    %460 = vmatprep.subr.mxu0 0.0
    %461 = vmatpush1.msra.mxu0 0.0
    %462 = vmatprep.subr.mxu0 0.0
    %463 = vmatpush1.msra.mxu0 0.0
    %464 = vmatprep.subr.mxu0 0.0
    %465 = vmatpush1.msra.mxu0 0.0
    %466 = vmatprep.subr.mxu0 0.0
    %467 = vmatpush1.msra.mxu0 0.0
    %468 = vmatprep.subr.mxu0 0.0
    %469 = vmatpush1.msra.mxu0 0.0
    %470 = vmatprep.subr.mxu0 0.0
    %471 = vmatpush1.msra.mxu0 0.0
    %472 = vmatprep.subr.mxu0 0.0
    %473 = vmatpush1.msra.mxu0 0.0
    %474 = vmatprep.subr.mxu0 0.0
    %475 = vmatpush1.msra.mxu0 0.0
    %476 = vmatprep.mubr.f32.mxu0 0.0
    %477 = vmatmul.mubr.f32.gmra.mrb[0].mxu0 %v410
    %v478 = vpop.f32.mrb[0].mxu0
    %v479 = vadd.f32 0.0, %v478
    %v480 = vpop.f32.mrb[0].mxu0
    %481 = vdwg.mxu0
    %v482 = vld [vmem:[%s1 + $0x48] sm:$0xff]
    %v483 = vld [vmem:[%s1 + $0x50] sm:$0xff]
    %v484 = vld [vmem:[%s1 + $0x58] sm:$0xff]
    %v485 = vld [vmem:[%s1 + $0x60] sm:$0xff]
    %v486 = vld [vmem:[%s1 + $0x68] sm:$0x1]
    %v487 = vlaneseq
    %v488 = vshrl.u32 %v487, 7
    %v489 = vsub.s32 0, %v488
    %v490 = vrot.slane %v486, %v489
    %v492 = vsel %vm50, %v479, 0
    %494 = vmatprep.subr.mxu0 0.0
    %495 = vmatpush1.msra.mxu0 %v482
    %496 = vmatprep.subr.mxu0 0.0
    %497 = vmatpush1.msra.mxu0 %v483
    %498 = vmatprep.subr.mxu0 0.0
    %499 = vmatpush1.msra.mxu0 %v484
    %500 = vmatprep.subr.mxu0 0.0
    %501 = vmatpush1.msra.mxu0 %v485
    %502 = vmatprep.subr.mxu0 0.0
    %503 = vmatpush1.msra.mxu0 0.0
    %504 = vmatprep.subr.mxu0 0.0
    %505 = vmatpush1.msra.mxu0 0.0
    %506 = vmatprep.subr.mxu0 0.0
    %507 = vmatpush1.msra.mxu0 0.0
    %508 = vmatprep.subr.mxu0 0.0
    %509 = vmatpush1.msra.mxu0 0.0
    %510 = vmatprep.subr.mxu0 0.0
    %511 = vmatpush1.msra.mxu0 0.0
    %512 = vmatprep.subr.mxu0 0.0
    %513 = vmatpush1.msra.mxu0 0.0
    %514 = vmatprep.subr.mxu0 0.0
    %515 = vmatpush1.msra.mxu0 0.0
    %516 = vmatprep.subr.mxu0 0.0
    %517 = vmatpush1.msra.mxu0 0.0
    %518 = vmatprep.subr.mxu0 0.0
    %519 = vmatpush1.msra.mxu0 0.0
    %520 = vmatprep.subr.mxu0 0.0
    %521 = vmatpush1.msra.mxu0 0.0
    %522 = vmatprep.subr.mxu0 0.0
    %523 = vmatpush1.msra.mxu0 0.0
    %524 = vmatprep.subr.mxu0 0.0
    %525 = vmatpush1.msra.mxu0 0.0
    %526 = vmatprep.subr.mxu0 0.0
    %527 = vmatpush1.msra.mxu0 0.0
    %528 = vmatprep.subr.mxu0 0.0
    %529 = vmatpush1.msra.mxu0 0.0
    %530 = vmatprep.subr.mxu0 0.0
    %531 = vmatpush1.msra.mxu0 0.0
    %532 = vmatprep.subr.mxu0 0.0
    %533 = vmatpush1.msra.mxu0 0.0
    %534 = vmatprep.subr.mxu0 0.0
    %535 = vmatpush1.msra.mxu0 0.0
    %536 = vmatprep.subr.mxu0 0.0
    %537 = vmatpush1.msra.mxu0 0.0
    %538 = vmatprep.subr.mxu0 0.0
    %539 = vmatpush1.msra.mxu0 0.0
    %540 = vmatprep.subr.mxu0 0.0
    %541 = vmatpush1.msra.mxu0 0.0
    %542 = vmatprep.subr.mxu0 0.0
    %543 = vmatpush1.msra.mxu0 0.0
    %544 = vmatprep.subr.mxu0 0.0
    %545 = vmatpush1.msra.mxu0 0.0
    %546 = vmatprep.subr.mxu0 0.0
    %547 = vmatpush1.msra.mxu0 0.0
    %548 = vmatprep.subr.mxu0 0.0
    %549 = vmatpush1.msra.mxu0 0.0
    %550 = vmatprep.subr.mxu0 0.0
    %551 = vmatpush1.msra.mxu0 0.0
    %552 = vmatprep.subr.mxu0 0.0
    %553 = vmatpush1.msra.mxu0 0.0
    %554 = vmatprep.subr.mxu0 0.0
    %555 = vmatpush1.msra.mxu0 0.0
    %556 = vmatprep.subr.mxu0 0.0
    %557 = vmatpush1.msra.mxu0 0.0
    %558 = vmatprep.mubr.f32.mxu0 0.0
    %559 = vmatmul.mubr.f32.gmra.mrb[0].mxu0 %v492
    %v560 = vpop.f32.mrb[0].mxu0
    %v561 = vadd.f32 %v490, %v560
    %v562 = vpop.f32.mrb[0].mxu0
    %563 = vdwg.mxu0
    %v564 = vtanh.pop %v561
    %v565 = vld [vmem:[%s0 + $0x40] sm:$0xff]
    %v566 = vld [vmem:[%s0 + $0x48] sm:$0xff]
    %v567 = vld [vmem:[%s0 + $0x50] sm:$0xff]
    %v568 = vld [vmem:[%s0 + $0x58] sm:$0xff]
    %vm569 = vcmp.eq.s32.totalorder %v565, %v21
    %vm570 = vcmp.eq.s32.totalorder %v566, %v21
    %vm571 = vcmp.eq.s32.totalorder %v567, %v21
    %vm572 = vcmp.eq.s32.totalorder %v568, %v21
    %v573 = vsel %vm569, 1, 0
    %v574 = vsel %vm570, 1, 0
    %v575 = vsel %vm571, 1, 0
    %v576 = vsel %vm572, 1, 0
    %v577 = vcvt.s32.f32 %v573
    %v578 = vcvt.s32.f32 %v574
    %v579 = vcvt.s32.f32 %v575
    %v580 = vcvt.s32.f32 %v576
    %v581 = vld [vmem:[%s0 + $0x60] sm:$0xff]
    %v582 = vld [vmem:[%s0 + $0x68] sm:$0xff]
    %v583 = vld [vmem:[%s0 + $0x70] sm:$0xff]
    %v584 = vld [vmem:[%s0 + $0x78] sm:$0xff]
    %vm585 = vcmp.eq.s32.totalorder %v581, %v21
    %vm586 = vcmp.eq.s32.totalorder %v582, %v21
    %vm587 = vcmp.eq.s32.totalorder %v583, %v21
    %vm588 = vcmp.eq.s32.totalorder %v584, %v21
    %v589 = vsel %vm585, 1, 0
    %v590 = vsel %vm586, 1, 0
    %v591 = vsel %vm587, 1, 0
    %v592 = vsel %vm588, 1, 0
    %v593 = vcvt.s32.f32 %v589
    %v594 = vcvt.s32.f32 %v590
    %v595 = vcvt.s32.f32 %v591
    %v596 = vcvt.s32.f32 %v592
    %v597 = vld [vmem:[%s1 + $0x70] sm:$0xff]
    %vm598 = vcmask 64512
    %v600 = vsel %vm598, %v593, 0
    %v603 = vsel %vm598, %v594, 0
    %v606 = vsel %vm598, %v595, 0
    %v609 = vsel %vm598, %v596, 0
    %611 = vmatprep.subr.mxu0 0.0
    %612 = vmatpush1.msra.mxu0 %v597
    %613 = vmatprep.subr.mxu0 0.0
    %614 = vmatpush1.msra.mxu0 0.0
    %615 = vmatprep.subr.mxu0 0.0
    %616 = vmatpush1.msra.mxu0 0.0
    %617 = vmatprep.subr.mxu0 0.0
    %618 = vmatpush1.msra.mxu0 0.0
    %619 = vmatprep.subr.mxu0 0.0
    %620 = vmatpush1.msra.mxu0 0.0
    %621 = vmatprep.subr.mxu0 0.0
    %622 = vmatpush1.msra.mxu0 0.0
    %623 = vmatprep.subr.mxu0 0.0
    %624 = vmatpush1.msra.mxu0 0.0
    %625 = vmatprep.subr.mxu0 0.0
    %626 = vmatpush1.msra.mxu0 0.0
    %627 = vmatprep.subr.mxu0 0.0
    %628 = vmatpush1.msra.mxu0 0.0
    %629 = vmatprep.subr.mxu0 0.0
    %630 = vmatpush1.msra.mxu0 0.0
    %631 = vmatprep.subr.mxu0 0.0
    %632 = vmatpush1.msra.mxu0 0.0
    %633 = vmatprep.subr.mxu0 0.0
    %634 = vmatpush1.msra.mxu0 0.0
    %635 = vmatprep.subr.mxu0 0.0
    %636 = vmatpush1.msra.mxu0 0.0
    %637 = vmatprep.subr.mxu0 0.0
    %638 = vmatpush1.msra.mxu0 0.0
    %639 = vmatprep.subr.mxu0 0.0
    %640 = vmatpush1.msra.mxu0 0.0
    %641 = vmatprep.subr.mxu0 0.0
    %642 = vmatpush1.msra.mxu0 0.0
    %643 = vmatprep.subr.mxu0 0.0
    %644 = vmatpush1.msra.mxu0 0.0
    %645 = vmatprep.subr.mxu0 0.0
    %646 = vmatpush1.msra.mxu0 0.0
    %647 = vmatprep.subr.mxu0 0.0
    %648 = vmatpush1.msra.mxu0 0.0
    %649 = vmatprep.subr.mxu0 0.0
    %650 = vmatpush1.msra.mxu0 0.0
    %651 = vmatprep.subr.mxu0 0.0
    %652 = vmatpush1.msra.mxu0 0.0
    %653 = vmatprep.subr.mxu0 0.0
    %654 = vmatpush1.msra.mxu0 0.0
    %655 = vmatprep.subr.mxu0 0.0
    %656 = vmatpush1.msra.mxu0 0.0
    %657 = vmatprep.subr.mxu0 0.0
    %658 = vmatpush1.msra.mxu0 0.0
    %659 = vmatprep.subr.mxu0 0.0
    %660 = vmatpush1.msra.mxu0 0.0
    %661 = vmatprep.subr.mxu0 0.0
    %662 = vmatpush1.msra.mxu0 0.0
    %663 = vmatprep.subr.mxu0 0.0
    %664 = vmatpush1.msra.mxu0 0.0
    %665 = vmatprep.subr.mxu0 0.0
    %666 = vmatpush1.msra.mxu0 0.0
    %667 = vmatprep.subr.mxu0 0.0
    %668 = vmatpush1.msra.mxu0 0.0
    %669 = vmatprep.subr.mxu0 0.0
    %670 = vmatpush1.msra.mxu0 0.0
    %671 = vmatprep.subr.mxu0 0.0
    %672 = vmatpush1.msra.mxu0 0.0
    %673 = vmatprep.subr.mxu0 0.0
    %674 = vmatpush1.msra.mxu0 0.0
    %675 = vmatprep.mubr.f32.mxu0 0.0
    %676 = vmatmul.mubr.f32.gmra.mrb[0].mxu0 %v600
    %v677 = vpop.f32.mrb[0].mxu0
    %v678 = vadd.f32 0.0, %v677
    %v679 = vpop.f32.mrb[0].mxu0
    %680 = vmatprep.mubr.f32.mxu0 0.0
    %681 = vmatmul.mubr.f32.gmra.mrb[0].mxu0 %v603
    %v682 = vpop.f32.mrb[0].mxu0
    %v683 = vadd.f32 0.0, %v682
    %v684 = vpop.f32.mrb[0].mxu0
    %685 = vmatprep.mubr.f32.mxu0 0.0
    %686 = vmatmul.mubr.f32.gmra.mrb[0].mxu0 %v606
    %v687 = vpop.f32.mrb[0].mxu0
    %v688 = vadd.f32 0.0, %v687
    %v689 = vpop.f32.mrb[0].mxu0
    %690 = vmatprep.mubr.f32.mxu0 0.0
    %691 = vmatmul.mubr.f32.gmra.mrb[0].mxu0 %v609
    %v692 = vpop.f32.mrb[0].mxu0
    %v693 = vadd.f32 0.0, %v692
    %v694 = vpop.f32.mrb[0].mxu0
    %695 = vdwg.mxu0
    %v697 = vsel %vm334, %v577, 0
    %v700 = vsel %vm334, %v578, 0
    %v703 = vsel %vm334, %v579, 0
    %v706 = vsel %vm334, %v580, 0
    %708 = vmatprep.subr.mxu0 0.0
    %709 = vmatpush1.msra.mxu0 %v318
    %710 = vmatprep.subr.mxu0 0.0
    %711 = vmatpush1.msra.mxu0 %v319
    %712 = vmatprep.subr.mxu0 0.0
    %713 = vmatpush1.msra.mxu0 %v320
    %714 = vmatprep.subr.mxu0 0.0
    %715 = vmatpush1.msra.mxu0 %v321
    %716 = vmatprep.subr.mxu0 0.0
    %717 = vmatpush1.msra.mxu0 %v322
    %718 = vmatprep.subr.mxu0 0.0
    %719 = vmatpush1.msra.mxu0 %v323
    %720 = vmatprep.subr.mxu0 0.0
    %721 = vmatpush1.msra.mxu0 %v324
    %722 = vmatprep.subr.mxu0 0.0
    %723 = vmatpush1.msra.mxu0 %v325
    %724 = vmatprep.subr.mxu0 0.0
    %725 = vmatpush1.msra.mxu0 0.0
    %726 = vmatprep.subr.mxu0 0.0
    %727 = vmatpush1.msra.mxu0 0.0
    %728 = vmatprep.subr.mxu0 0.0
    %729 = vmatpush1.msra.mxu0 0.0
    %730 = vmatprep.subr.mxu0 0.0
    %731 = vmatpush1.msra.mxu0 0.0
    %732 = vmatprep.subr.mxu0 0.0
    %733 = vmatpush1.msra.mxu0 0.0
    %734 = vmatprep.subr.mxu0 0.0
    %735 = vmatpush1.msra.mxu0 0.0
    %736 = vmatprep.subr.mxu0 0.0
    %737 = vmatpush1.msra.mxu0 0.0
    %738 = vmatprep.subr.mxu0 0.0
    %739 = vmatpush1.msra.mxu0 0.0
    %740 = vmatprep.subr.mxu0 0.0
    %741 = vmatpush1.msra.mxu0 0.0
    %742 = vmatprep.subr.mxu0 0.0
    %743 = vmatpush1.msra.mxu0 0.0
    %744 = vmatprep.subr.mxu0 0.0
    %745 = vmatpush1.msra.mxu0 0.0
    %746 = vmatprep.subr.mxu0 0.0
    %747 = vmatpush1.msra.mxu0 0.0
    %748 = vmatprep.subr.mxu0 0.0
    %749 = vmatpush1.msra.mxu0 0.0
    %750 = vmatprep.subr.mxu0 0.0
    %751 = vmatpush1.msra.mxu0 0.0
    %752 = vmatprep.subr.mxu0 0.0
    %753 = vmatpush1.msra.mxu0 0.0
    %754 = vmatprep.subr.mxu0 0.0
    %755 = vmatpush1.msra.mxu0 0.0
    %756 = vmatprep.subr.mxu0 0.0
    %757 = vmatpush1.msra.mxu0 0.0
    %758 = vmatprep.subr.mxu0 0.0
    %759 = vmatpush1.msra.mxu0 0.0
    %760 = vmatprep.subr.mxu0 0.0
    %761 = vmatpush1.msra.mxu0 0.0
    %762 = vmatprep.subr.mxu0 0.0
    %763 = vmatpush1.msra.mxu0 0.0
    %764 = vmatprep.subr.mxu0 0.0
    %765 = vmatpush1.msra.mxu0 0.0
    %766 = vmatprep.subr.mxu0 0.0
    %767 = vmatpush1.msra.mxu0 0.0
    %768 = vmatprep.subr.mxu0 0.0
    %769 = vmatpush1.msra.mxu0 0.0
    %770 = vmatprep.subr.mxu0 0.0
    %771 = vmatpush1.msra.mxu0 0.0
    %772 = vmatprep.mubr.f32.mxu0 0.0
    %773 = vmatmul.mubr.f32.gmra.mrb[0].mxu0 %v697
    %v774 = vpop.f32.mrb[0].mxu0
    %v775 = vadd.f32 %v678, %v774
    %v776 = vpop.f32.mrb[0].mxu0
    %777 = vmatprep.mubr.f32.mxu0 0.0
    %778 = vmatmul.mubr.f32.gmra.mrb[0].mxu0 %v700
    %v779 = vpop.f32.mrb[0].mxu0
    %v780 = vadd.f32 %v683, %v779
    %v781 = vpop.f32.mrb[0].mxu0
    %782 = vmatprep.mubr.f32.mxu0 0.0
    %783 = vmatmul.mubr.f32.gmra.mrb[0].mxu0 %v703
    %v784 = vpop.f32.mrb[0].mxu0
    %v785 = vadd.f32 %v688, %v784
    %v786 = vpop.f32.mrb[0].mxu0
    %787 = vmatprep.mubr.f32.mxu0 0.0
    %788 = vmatmul.mubr.f32.gmra.mrb[0].mxu0 %v706
    %v789 = vpop.f32.mrb[0].mxu0
    %v790 = vadd.f32 %v693, %v789
    %v791 = vpop.f32.mrb[0].mxu0
    %792 = vdwg.mxu0
    %v793 = vld [vmem:[%s1 + $0x78] sm:$0x1]
    %v794 = vlaneseq
    %v795 = vshrl.u32 %v794, 7
    %v796 = vsub.s32 0, %v795
    %v797 = vrot.slane %v793, %v796
    %v798 = vadd.f32 %v775, %v797
    %v799 = vadd.f32 %v780, %v797
    %v800 = vadd.f32 %v785, %v797
    %v801 = vadd.f32 %v790, %v797
    %v802 = vld [vmem:[%s1 + $0x160] sm:$0xff]
    %v803 = vld [vmem:[%s1 + $0x168] sm:$0xff]
    %v804 = vld [vmem:[%s1 + $0x170] sm:$0xff]
    %vm805 = vcmask 31744
    %v807 = vsel %vm805, %v802, 0
    %v810 = vsel %vm805, %v803, 0
    %v813 = vsel %vm805, %v804, 0
    %vm815 = vcmask 1043456
    %v817 = vsel %vm815, %v405, 0
    %819 = vmatprep.subr.mxu0 0.0
    %820 = vmatpush1.msra.mxu0 %v817
    %821 = vmatprep.subr.mxu0 0.0
    %822 = vmatpush1.msra.mxu0 0.0
    %823 = vmatprep.subr.mxu0 0.0
    %824 = vmatpush1.msra.mxu0 0.0
    %825 = vmatprep.subr.mxu0 0.0
    %826 = vmatpush1.msra.mxu0 0.0
    %827 = vmatprep.subr.mxu0 0.0
    %828 = vmatpush1.msra.mxu0 0.0
    %829 = vmatprep.subr.mxu0 0.0
    %830 = vmatpush1.msra.mxu0 0.0
    %831 = vmatprep.subr.mxu0 0.0
    %832 = vmatpush1.msra.mxu0 0.0
    %833 = vmatprep.subr.mxu0 0.0
    %834 = vmatpush1.msra.mxu0 0.0
    %835 = vmatprep.subr.mxu0 0.0
    %836 = vmatpush1.msra.mxu0 0.0
    %837 = vmatprep.subr.mxu0 0.0
    %838 = vmatpush1.msra.mxu0 0.0
    %839 = vmatprep.subr.mxu0 0.0
    %840 = vmatpush1.msra.mxu0 0.0
    %841 = vmatprep.subr.mxu0 0.0
    %842 = vmatpush1.msra.mxu0 0.0
    %843 = vmatprep.subr.mxu0 0.0
    %844 = vmatpush1.msra.mxu0 0.0
    %845 = vmatprep.subr.mxu0 0.0
    %846 = vmatpush1.msra.mxu0 0.0
    %847 = vmatprep.subr.mxu0 0.0
    %848 = vmatpush1.msra.mxu0 0.0
    %849 = vmatprep.subr.mxu0 0.0
    %850 = vmatpush1.msra.mxu0 0.0
    %851 = vmatprep.subr.mxu0 0.0
    %852 = vmatpush1.msra.mxu0 0.0
    %853 = vmatprep.subr.mxu0 0.0
    %854 = vmatpush1.msra.mxu0 0.0
    %855 = vmatprep.subr.mxu0 0.0
    %856 = vmatpush1.msra.mxu0 0.0
    %857 = vmatprep.subr.mxu0 0.0
    %858 = vmatpush1.msra.mxu0 0.0
    %859 = vmatprep.subr.mxu0 0.0
    %860 = vmatpush1.msra.mxu0 0.0
    %861 = vmatprep.subr.mxu0 0.0
    %862 = vmatpush1.msra.mxu0 0.0
    %863 = vmatprep.subr.mxu0 0.0
    %864 = vmatpush1.msra.mxu0 0.0
    %865 = vmatprep.subr.mxu0 0.0
    %866 = vmatpush1.msra.mxu0 0.0
    %867 = vmatprep.subr.mxu0 0.0
    %868 = vmatpush1.msra.mxu0 0.0
    %869 = vmatprep.subr.mxu0 0.0
    %870 = vmatpush1.msra.mxu0 0.0
    %871 = vmatprep.subr.mxu0 0.0
    %872 = vmatpush1.msra.mxu0 0.0
    %873 = vmatprep.subr.mxu0 0.0
    %874 = vmatpush1.msra.mxu0 0.0
    %875 = vmatprep.subr.mxu0 0.0
    %876 = vmatpush1.msra.mxu0 0.0
    %877 = vmatprep.subr.mxu0 0.0
    %878 = vmatpush1.msra.mxu0 0.0
    %879 = vmatprep.subr.mxu0 0.0
    %880 = vmatpush1.msra.mxu0 0.0
    %881 = vmatprep.subr.mxu0 0.0
    %882 = vmatpush1.msra.mxu0 0.0
    %883 = vmatprep.mubr.f32.mxu0 0.0
    %884 = vmatmul.mubr.f32.gmra.mrb[0].mxu0 %v807
    %v885 = vpop.f32.mrb[0].mxu0
    %v886 = vadd.f32 0.0, %v885
    %v887 = vpop.f32.mrb[0].mxu0
    %888 = vmatprep.mubr.f32.mxu0 0.0
    %889 = vmatmul.mubr.f32.gmra.mrb[0].mxu0 %v810
    %v890 = vpop.f32.mrb[0].mxu0
    %v891 = vadd.f32 0.0, %v890
    %v892 = vpop.f32.mrb[0].mxu0
    %893 = vmatprep.mubr.f32.mxu0 0.0
    %894 = vmatmul.mubr.f32.gmra.mrb[0].mxu0 %v813
    %v895 = vpop.f32.mrb[0].mxu0
    %v896 = vadd.f32 0.0, %v895
    %v897 = vpop.f32.mrb[0].mxu0
    %898 = vdwg.mxu0
    %v899 = vmul.f32 %v891, %v896
    %v900 = vadd.f32 %v896, %v899
    %v901 = vld [vmem:[%s1 + $0x80] sm:$0x1]
    %v902 = vlaneseq
    %v903 = vshrl.u32 %v902, 7
    %v904 = vsub.s32 0, %v903
    %v905 = vrot.slane %v901, %v904
    %v906 = vadd.f32 %v900, %v905
    %v907 = vld [vmem:[%s1 + $0xa8] sm:$0xff]
    %v908 = vld [vmem:[%s1 + $0xb0] sm:$0xff]
    %v909 = vld [vmem:[%s1 + $0xb8] sm:$0xff]
    %v910 = vld [vmem:[%s1 + $0xc0] sm:$0xff]
    %v912 = vsel %vm50, %v798, 0
    %v915 = vsel %vm50, %v799, 0
    %v918 = vsel %vm50, %v800, 0
    %v921 = vsel %vm50, %v801, 0
    %v924 = vsel %vm50, %v906, 0
    %926 = vmatprep.subr.mxu0 0.0
    %927 = vmatpush1.msra.mxu0 %v907
    %928 = vmatprep.subr.mxu0 0.0
    %929 = vmatpush1.msra.mxu0 %v908
    %930 = vmatprep.subr.mxu0 0.0
    %931 = vmatpush1.msra.mxu0 %v909
    %932 = vmatprep.subr.mxu0 0.0
    %933 = vmatpush1.msra.mxu0 %v910
    %934 = vmatprep.subr.mxu0 0.0
    %935 = vmatpush1.msra.mxu0 0.0
    %936 = vmatprep.subr.mxu0 0.0
    %937 = vmatpush1.msra.mxu0 0.0
    %938 = vmatprep.subr.mxu0 0.0
    %939 = vmatpush1.msra.mxu0 0.0
    %940 = vmatprep.subr.mxu0 0.0
    %941 = vmatpush1.msra.mxu0 0.0
    %942 = vmatprep.subr.mxu0 0.0
    %943 = vmatpush1.msra.mxu0 0.0
    %944 = vmatprep.subr.mxu0 0.0
    %945 = vmatpush1.msra.mxu0 0.0
    %946 = vmatprep.subr.mxu0 0.0
    %947 = vmatpush1.msra.mxu0 0.0
    %948 = vmatprep.subr.mxu0 0.0
    %949 = vmatpush1.msra.mxu0 0.0
    %950 = vmatprep.subr.mxu0 0.0
    %951 = vmatpush1.msra.mxu0 0.0
    %952 = vmatprep.subr.mxu0 0.0
    %953 = vmatpush1.msra.mxu0 0.0
    %954 = vmatprep.subr.mxu0 0.0
    %955 = vmatpush1.msra.mxu0 0.0
    %956 = vmatprep.subr.mxu0 0.0
    %957 = vmatpush1.msra.mxu0 0.0
    %958 = vmatprep.subr.mxu0 0.0
    %959 = vmatpush1.msra.mxu0 0.0
    %960 = vmatprep.subr.mxu0 0.0
    %961 = vmatpush1.msra.mxu0 0.0
    %962 = vmatprep.subr.mxu0 0.0
    %963 = vmatpush1.msra.mxu0 0.0
    %964 = vmatprep.subr.mxu0 0.0
    %965 = vmatpush1.msra.mxu0 0.0
    %966 = vmatprep.subr.mxu0 0.0
    %967 = vmatpush1.msra.mxu0 0.0
    %968 = vmatprep.subr.mxu0 0.0
    %969 = vmatpush1.msra.mxu0 0.0
    %970 = vmatprep.subr.mxu0 0.0
    %971 = vmatpush1.msra.mxu0 0.0
    %972 = vmatprep.subr.mxu0 0.0
    %973 = vmatpush1.msra.mxu0 0.0
    %974 = vmatprep.subr.mxu0 0.0
    %975 = vmatpush1.msra.mxu0 0.0
    %976 = vmatprep.subr.mxu0 0.0
    %977 = vmatpush1.msra.mxu0 0.0
    %978 = vmatprep.subr.mxu0 0.0
    %979 = vmatpush1.msra.mxu0 0.0
    %980 = vmatprep.subr.mxu0 0.0
    %981 = vmatpush1.msra.mxu0 0.0
    %982 = vmatprep.subr.mxu0 0.0
    %983 = vmatpush1.msra.mxu0 0.0
    %984 = vmatprep.subr.mxu0 0.0
    %985 = vmatpush1.msra.mxu0 0.0
    %986 = vmatprep.subr.mxu0 0.0
    %987 = vmatpush1.msra.mxu0 0.0
    %988 = vmatprep.subr.mxu0 0.0
    %989 = vmatpush1.msra.mxu0 0.0
    %990 = vmatprep.mubr.f32.mxu0 0.0
    %991 = vmatmul.mubr.f32.gmra.mrb[0].mxu0 %v912
    %v992 = vpop.f32.mrb[0].mxu0
    %v993 = vadd.f32 0.0, %v992
    %v994 = vpop.f32.mrb[0].mxu0
    %995 = vmatprep.mubr.f32.mxu0 0.0
    %996 = vmatmul.mubr.f32.gmra.mrb[0].mxu0 %v915
    %v997 = vpop.f32.mrb[0].mxu0
    %v998 = vadd.f32 0.0, %v997
    %v999 = vpop.f32.mrb[0].mxu0
    %1000 = vmatprep.mubr.f32.mxu0 0.0
    %1001 = vmatmul.mubr.f32.gmra.mrb[0].mxu0 %v918
    %v1002 = vpop.f32.mrb[0].mxu0
    %v1003 = vadd.f32 0.0, %v1002
    %v1004 = vpop.f32.mrb[0].mxu0
    %1005 = vmatprep.mubr.f32.mxu0 0.0
    %1006 = vmatmul.mubr.f32.gmra.mrb[0].mxu0 %v921
    %v1007 = vpop.f32.mrb[0].mxu0
    %v1008 = vadd.f32 0.0, %v1007
    %v1009 = vpop.f32.mrb[0].mxu0
    %1010 = vmatprep.mubr.f32.mxu0 0.0
    %1011 = vmatmul.mubr.f32.gmra.mrb[0].mxu0 %v924
    %v1012 = vpop.f32.mrb[0].mxu0
    %v1013 = vadd.f32 0.0, %v1012
    %v1014 = vpop.f32.mrb[0].mxu0
    %1015 = vdwg.mxu0
    %v1016 = vld [vmem:[%s1 + $0x88] sm:$0xff]
    %v1017 = vld [vmem:[%s1 + $0x90] sm:$0xff]
    %v1018 = vld [vmem:[%s1 + $0x98] sm:$0xff]
    %v1019 = vld [vmem:[%s1 + $0xa0] sm:$0xff]
    %v1021 = vsel %vm50, %v886, 0
    %1023 = vmatprep.subr.mxu0 0.0
    %1024 = vmatpush1.msra.mxu0 %v1016
    %1025 = vmatprep.subr.mxu0 0.0
    %1026 = vmatpush1.msra.mxu0 %v1017
    %1027 = vmatprep.subr.mxu0 0.0
    %1028 = vmatpush1.msra.mxu0 %v1018
    %1029 = vmatprep.subr.mxu0 0.0
    %1030 = vmatpush1.msra.mxu0 %v1019
    %1031 = vmatprep.subr.mxu0 0.0
    %1032 = vmatpush1.msra.mxu0 0.0
    %1033 = vmatprep.subr.mxu0 0.0
    %1034 = vmatpush1.msra.mxu0 0.0
    %1035 = vmatprep.subr.mxu0 0.0
    %1036 = vmatpush1.msra.mxu0 0.0
    %1037 = vmatprep.subr.mxu0 0.0
    %1038 = vmatpush1.msra.mxu0 0.0
    %1039 = vmatprep.subr.mxu0 0.0
    %1040 = vmatpush1.msra.mxu0 0.0
    %1041 = vmatprep.subr.mxu0 0.0
    %1042 = vmatpush1.msra.mxu0 0.0
    %1043 = vmatprep.subr.mxu0 0.0
    %1044 = vmatpush1.msra.mxu0 0.0
    %1045 = vmatprep.subr.mxu0 0.0
    %1046 = vmatpush1.msra.mxu0 0.0
    %1047 = vmatprep.subr.mxu0 0.0
    %1048 = vmatpush1.msra.mxu0 0.0
    %1049 = vmatprep.subr.mxu0 0.0
    %1050 = vmatpush1.msra.mxu0 0.0
    %1051 = vmatprep.subr.mxu0 0.0
    %1052 = vmatpush1.msra.mxu0 0.0
    %1053 = vmatprep.subr.mxu0 0.0
    %1054 = vmatpush1.msra.mxu0 0.0
    %1055 = vmatprep.subr.mxu0 0.0
    %1056 = vmatpush1.msra.mxu0 0.0
    %1057 = vmatprep.subr.mxu0 0.0
    %1058 = vmatpush1.msra.mxu0 0.0
    %1059 = vmatprep.subr.mxu0 0.0
    %1060 = vmatpush1.msra.mxu0 0.0
    %1061 = vmatprep.subr.mxu0 0.0
    %1062 = vmatpush1.msra.mxu0 0.0
    %1063 = vmatprep.subr.mxu0 0.0
    %1064 = vmatpush1.msra.mxu0 0.0
    %1065 = vmatprep.subr.mxu0 0.0
    %1066 = vmatpush1.msra.mxu0 0.0
    %1067 = vmatprep.subr.mxu0 0.0
    %1068 = vmatpush1.msra.mxu0 0.0
    %1069 = vmatprep.subr.mxu0 0.0
    %1070 = vmatpush1.msra.mxu0 0.0
    %1071 = vmatprep.subr.mxu0 0.0
    %1072 = vmatpush1.msra.mxu0 0.0
    %1073 = vmatprep.subr.mxu0 0.0
    %1074 = vmatpush1.msra.mxu0 0.0
    %1075 = vmatprep.subr.mxu0 0.0
    %1076 = vmatpush1.msra.mxu0 0.0
    %1077 = vmatprep.subr.mxu0 0.0
    %1078 = vmatpush1.msra.mxu0 0.0
    %1079 = vmatprep.subr.mxu0 0.0
    %1080 = vmatpush1.msra.mxu0 0.0
    %1081 = vmatprep.subr.mxu0 0.0
    %1082 = vmatpush1.msra.mxu0 0.0
    %1083 = vmatprep.subr.mxu0 0.0
    %1084 = vmatpush1.msra.mxu0 0.0
    %1085 = vmatprep.subr.mxu0 0.0
    %1086 = vmatpush1.msra.mxu0 0.0
    %1087 = vmatprep.mubr.f32.mxu0 0.0
    %1088 = vmatmul.mubr.f32.gmra.mrb[0].mxu0 %v1021
    %v1089 = vpop.f32.mrb[0].mxu0
    %v1090 = vadd.f32 0.0, %v1089
    %v1091 = vpop.f32.mrb[0].mxu0
    %1092 = vdwg.mxu0
    %v1093 = vld [vmem:[%s1 + $0x178] sm:$0xff]
    %v1094 = vmul.f32 %v1090, %v1093
    %v1095 = vld [vmem:[%s1 + $0x190] sm:$0xff]
    %v1097 = vsel %vm334, %v1094, 0
    %v1100 = vsel %vm334, %v993, 0
    %v1103 = vsel %vm334, %v998, 0
    %v1106 = vsel %vm334, %v1003, 0
    %v1109 = vsel %vm334, %v1008, 0
    %v1112 = vsel %vm334, %v1013, 0
    %1114 = vmatprep.subr.mxu0 0.0
    %1115 = vmatpush1.xpose.msra.mxu0 %v1100
    %1116 = vmatprep.subr.mxu0 0.0
    %1117 = vmatpush1.xpose.msra.mxu0 %v1103
    %1118 = vmatprep.subr.mxu0 0.0
    %1119 = vmatpush1.xpose.msra.mxu0 %v1106
    %1120 = vmatprep.subr.mxu0 0.0
    %1121 = vmatpush1.xpose.msra.mxu0 %v1109
    %1122 = vmatprep.subr.mxu0 0.0
    %1123 = vmatpush1.xpose.msra.mxu0 %v1112
    %1124 = vmatprep.subr.mxu0 0.0
    %1125 = vmatpush1.xpose.msra.mxu0 0.0
    %1126 = vmatprep.subr.mxu0 0.0
    %1127 = vmatpush1.xpose.msra.mxu0 0.0
    %1128 = vmatprep.subr.mxu0 0.0
    %1129 = vmatpush1.xpose.msra.mxu0 0.0
    %1130 = vmatprep.subr.mxu0 0.0
    %1131 = vmatpush1.xpose.msra.mxu0 0.0
    %1132 = vmatprep.subr.mxu0 0.0
    %1133 = vmatpush1.xpose.msra.mxu0 0.0
    %1134 = vmatprep.subr.mxu0 0.0
    %1135 = vmatpush1.xpose.msra.mxu0 0.0
    %1136 = vmatprep.subr.mxu0 0.0
    %1137 = vmatpush1.xpose.msra.mxu0 0.0
    %1138 = vmatprep.subr.mxu0 0.0
    %1139 = vmatpush1.xpose.msra.mxu0 0.0
    %1140 = vmatprep.subr.mxu0 0.0
    %1141 = vmatpush1.xpose.msra.mxu0 0.0
    %1142 = vmatprep.subr.mxu0 0.0
    %1143 = vmatpush1.xpose.msra.mxu0 0.0
    %1144 = vmatprep.subr.mxu0 0.0
    %1145 = vmatpush1.xpose.msra.mxu0 0.0
    %1146 = vmatprep.subr.mxu0 0.0
    %1147 = vmatpush1.xpose.msra.mxu0 0.0
    %1148 = vmatprep.subr.mxu0 0.0
    %1149 = vmatpush1.xpose.msra.mxu0 0.0
    %1150 = vmatprep.subr.mxu0 0.0
    %1151 = vmatpush1.xpose.msra.mxu0 0.0
    %1152 = vmatprep.subr.mxu0 0.0
    %1153 = vmatpush1.xpose.msra.mxu0 0.0
    %1154 = vmatprep.subr.mxu0 0.0
    %1155 = vmatpush1.xpose.msra.mxu0 0.0
    %1156 = vmatprep.subr.mxu0 0.0
    %1157 = vmatpush1.xpose.msra.mxu0 0.0
    %1158 = vmatprep.subr.mxu0 0.0
    %1159 = vmatpush1.xpose.msra.mxu0 0.0
    %1160 = vmatprep.subr.mxu0 0.0
    %1161 = vmatpush1.xpose.msra.mxu0 0.0
    %1162 = vmatprep.subr.mxu0 0.0
    %1163 = vmatpush1.xpose.msra.mxu0 0.0
    %1164 = vmatprep.subr.mxu0 0.0
    %1165 = vmatpush1.xpose.msra.mxu0 0.0
    %1166 = vmatprep.subr.mxu0 0.0
    %1167 = vmatpush1.xpose.msra.mxu0 0.0
    %1168 = vmatprep.subr.mxu0 0.0
    %1169 = vmatpush1.xpose.msra.mxu0 0.0
    %1170 = vmatprep.subr.mxu0 0.0
    %1171 = vmatpush1.xpose.msra.mxu0 0.0
    %1172 = vmatprep.subr.mxu0 0.0
    %1173 = vmatpush1.xpose.msra.mxu0 0.0
    %1174 = vmatprep.subr.mxu0 0.0
    %1175 = vmatpush1.xpose.msra.mxu0 0.0
    %1176 = vmatprep.subr.mxu0 0.0
    %1177 = vmatpush1.xpose.msra.mxu0 0.0
    %1178 = vmatprep.mubr.f32.mxu0 0.0
    %1179 = vmatmul.mubr.f32.gmra.mrb[0].mxu0 %v1097
    %v1180 = vpop.f32.mrb[0].mxu0
    %v1181 = vadd.f32 %v1095, %v1180
    %v1182 = vpop.f32.mrb[0].mxu0
    %1183 = vdwg.mxu0
    %v1184 = vld [vmem:[%s0 + $0x88] sm:$0x1]
    %vm1185 = vcmp.ne.s32.totalorder %v1184, 1
    %v1186 = vsel %vm1185, 1, 0
    %v1187 = vlaneseq
    %v1188 = vshrl.u32 %v1187, 7
    %v1189 = vsub.s32 0, %v1188
    %v1190 = vrot.slane %v1186, %v1189
    %vm1191 = vcmp.eq.s32.totalorder %v1190, 1
    %v1192 = vsel %vm1191, %v1181, -1e+30
    %vm1193 = vcmask 326656
    %v1194 = vsel %vm1193, %v1192, -inf
    %1195 = vmax.xlane.f32.xlu0 %v1194
    %v1196 = vpop.xlane.xlu0 %1195
    %v1197 = vsub.f32 %v1192, %v1196
    %v1198 = vmul.f32 %v1197, 1.442695
    %v1199 = vpow.pop %v1198
    %v1200 = vsel %vm1193, %v1199, 0.0
    %1201 = vadd.xlane.f32.xlu0 %v1200
    %v1202 = vpop.xlane.xlu0 %1201
    %v1203 = vrcp.pop %v1202
    %v1204 = vmul.f32 %v1199, %v1203
    %v1206 = vsel %vm1193, %v1204, 0
    %1208 = vmatprep.subr.mxu0 0.0
    %1209 = vmatpush1.msra.mxu0 %v993
    %1210 = vmatprep.subr.mxu0 0.0
    %1211 = vmatpush1.msra.mxu0 %v998
    %1212 = vmatprep.subr.mxu0 0.0
    %1213 = vmatpush1.msra.mxu0 %v1003
    %1214 = vmatprep.subr.mxu0 0.0
    %1215 = vmatpush1.msra.mxu0 %v1008
    %1216 = vmatprep.subr.mxu0 0.0
    %1217 = vmatpush1.msra.mxu0 %v1013
    %1218 = vmatprep.subr.mxu0 0.0
    %1219 = vmatpush1.msra.mxu0 0.0
    %1220 = vmatprep.subr.mxu0 0.0
    %1221 = vmatpush1.msra.mxu0 0.0
    %1222 = vmatprep.subr.mxu0 0.0
    %1223 = vmatpush1.msra.mxu0 0.0
    %1224 = vmatprep.subr.mxu0 0.0
    %1225 = vmatpush1.msra.mxu0 0.0
    %1226 = vmatprep.subr.mxu0 0.0
    %1227 = vmatpush1.msra.mxu0 0.0
    %1228 = vmatprep.subr.mxu0 0.0
    %1229 = vmatpush1.msra.mxu0 0.0
    %1230 = vmatprep.subr.mxu0 0.0
    %1231 = vmatpush1.msra.mxu0 0.0
    %1232 = vmatprep.subr.mxu0 0.0
    %1233 = vmatpush1.msra.mxu0 0.0
    %1234 = vmatprep.subr.mxu0 0.0
    %1235 = vmatpush1.msra.mxu0 0.0
    %1236 = vmatprep.subr.mxu0 0.0
    %1237 = vmatpush1.msra.mxu0 0.0
    %1238 = vmatprep.subr.mxu0 0.0
    %1239 = vmatpush1.msra.mxu0 0.0
    %1240 = vmatprep.subr.mxu0 0.0
    %1241 = vmatpush1.msra.mxu0 0.0
    %1242 = vmatprep.subr.mxu0 0.0
    %1243 = vmatpush1.msra.mxu0 0.0
    %1244 = vmatprep.subr.mxu0 0.0
    %1245 = vmatpush1.msra.mxu0 0.0
    %1246 = vmatprep.subr.mxu0 0.0
    %1247 = vmatpush1.msra.mxu0 0.0
    %1248 = vmatprep.subr.mxu0 0.0
    %1249 = vmatpush1.msra.mxu0 0.0
    %1250 = vmatprep.subr.mxu0 0.0
    %1251 = vmatpush1.msra.mxu0 0.0
    %1252 = vmatprep.subr.mxu0 0.0
    %1253 = vmatpush1.msra.mxu0 0.0
    %1254 = vmatprep.subr.mxu0 0.0
    %1255 = vmatpush1.msra.mxu0 0.0
    %1256 = vmatprep.subr.mxu0 0.0
    %1257 = vmatpush1.msra.mxu0 0.0
    %1258 = vmatprep.subr.mxu0 0.0
    %1259 = vmatpush1.msra.mxu0 0.0
    %1260 = vmatprep.subr.mxu0 0.0
    %1261 = vmatpush1.msra.mxu0 0.0
    %1262 = vmatprep.subr.mxu0 0.0
    %1263 = vmatpush1.msra.mxu0 0.0
    %1264 = vmatprep.subr.mxu0 0.0
    %1265 = vmatpush1.msra.mxu0 0.0
    %1266 = vmatprep.subr.mxu0 0.0
    %1267 = vmatpush1.msra.mxu0 0.0
    %1268 = vmatprep.subr.mxu0 0.0
    %1269 = vmatpush1.msra.mxu0 0.0
    %1270 = vmatprep.subr.mxu0 0.0
    %1271 = vmatpush1.msra.mxu0 0.0
    %1272 = vmatprep.mubr.f32.mxu0 0.0
    %1273 = vmatmul.mubr.f32.gmra.mrb[0].mxu0 %v1206
    %v1274 = vpop.f32.mrb[0].mxu0
    %v1275 = vadd.f32 0.0, %v1274
    %v1276 = vpop.f32.mrb[0].mxu0
    %1277 = vdwg.mxu0
    %v1278 = vld [vmem:[%s1 + $0x188] sm:$0xf]
    %v1279 = vld [vmem:[%s1 + $0x180] sm:$0xff]
    %v1280 = vmul.f32 %v1275, %v1279
    %v1282 = vsel %vm598, %v1278, 0
    %1284 = vmatprep.subr.mxu0 0.0
    %1285 = vmatpush1.msra.mxu0 %v1280
    %1286 = vmatprep.subr.mxu0 0.0
    %1287 = vmatpush1.msra.mxu0 0.0
    %1288 = vmatprep.subr.mxu0 0.0
    %1289 = vmatpush1.msra.mxu0 0.0
    %1290 = vmatprep.subr.mxu0 0.0
    %1291 = vmatpush1.msra.mxu0 0.0
    %1292 = vmatprep.subr.mxu0 0.0
    %1293 = vmatpush1.msra.mxu0 0.0
    %1294 = vmatprep.subr.mxu0 0.0
    %1295 = vmatpush1.msra.mxu0 0.0
    %1296 = vmatprep.subr.mxu0 0.0
    %1297 = vmatpush1.msra.mxu0 0.0
    %1298 = vmatprep.subr.mxu0 0.0
    %1299 = vmatpush1.msra.mxu0 0.0
    %1300 = vmatprep.subr.mxu0 0.0
    %1301 = vmatpush1.msra.mxu0 0.0
    %1302 = vmatprep.subr.mxu0 0.0
    %1303 = vmatpush1.msra.mxu0 0.0
    %1304 = vmatprep.subr.mxu0 0.0
    %1305 = vmatpush1.msra.mxu0 0.0
    %1306 = vmatprep.subr.mxu0 0.0
    %1307 = vmatpush1.msra.mxu0 0.0
    %1308 = vmatprep.subr.mxu0 0.0
    %1309 = vmatpush1.msra.mxu0 0.0
    %1310 = vmatprep.subr.mxu0 0.0
    %1311 = vmatpush1.msra.mxu0 0.0
    %1312 = vmatprep.subr.mxu0 0.0
    %1313 = vmatpush1.msra.mxu0 0.0
    %1314 = vmatprep.subr.mxu0 0.0
    %1315 = vmatpush1.msra.mxu0 0.0
    %1316 = vmatprep.subr.mxu0 0.0
    %1317 = vmatpush1.msra.mxu0 0.0
    %1318 = vmatprep.subr.mxu0 0.0
    %1319 = vmatpush1.msra.mxu0 0.0
    %1320 = vmatprep.subr.mxu0 0.0
    %1321 = vmatpush1.msra.mxu0 0.0
    %1322 = vmatprep.subr.mxu0 0.0
    %1323 = vmatpush1.msra.mxu0 0.0
    %1324 = vmatprep.subr.mxu0 0.0
    %1325 = vmatpush1.msra.mxu0 0.0
    %1326 = vmatprep.subr.mxu0 0.0
    %1327 = vmatpush1.msra.mxu0 0.0
    %1328 = vmatprep.subr.mxu0 0.0
    %1329 = vmatpush1.msra.mxu0 0.0
    %1330 = vmatprep.subr.mxu0 0.0
    %1331 = vmatpush1.msra.mxu0 0.0
    %1332 = vmatprep.subr.mxu0 0.0
    %1333 = vmatpush1.msra.mxu0 0.0
    %1334 = vmatprep.subr.mxu0 0.0
    %1335 = vmatpush1.msra.mxu0 0.0
    %1336 = vmatprep.subr.mxu0 0.0
    %1337 = vmatpush1.msra.mxu0 0.0
    %1338 = vmatprep.subr.mxu0 0.0
    %1339 = vmatpush1.msra.mxu0 0.0
    %1340 = vmatprep.subr.mxu0 0.0
    %1341 = vmatpush1.msra.mxu0 0.0
    %1342 = vmatprep.subr.mxu0 0.0
    %1343 = vmatpush1.msra.mxu0 0.0
    %1344 = vmatprep.subr.mxu0 0.0
    %1345 = vmatpush1.msra.mxu0 0.0
    %1346 = vmatprep.subr.mxu0 0.0
    %1347 = vmatpush1.msra.mxu0 0.0
    %1348 = vmatprep.mubr.f32.mxu0 0.0
    %1349 = vmatmul.mubr.f32.gmra.mrb[0].mxu0 %v1282
    %v1350 = vpop.f32.mrb[0].mxu0
    %v1351 = vadd.f32 0.0, %v1350
    %v1352 = vpop.f32.mrb[0].mxu0
    %1353 = vdwg.mxu0
    %v1354 = vld [vmem:[%s1 + $0x140] sm:$0x1]
    %v1355 = vlaneseq
    %v1356 = vshrl.u32 %v1355, 7
    %v1357 = vsub.s32 0, %v1356
    %v1358 = vrot.slane %v1354, %v1357
    %v1359 = vmul.f32 %v1351, %v1358
    %v1360 = vld [vmem:[%s1 + $0x148] sm:$0x1]
    %v1361 = vlaneseq
    %v1362 = vshrl.u32 %v1361, 7
    %v1363 = vsub.s32 0, %v1362
    %v1364 = vrot.slane %v1360, %v1363
    %v1365 = vmul.f32 %v564, %v1364
    %v1366 = vadd.f32 %v1359, %v1365
    %v1367 = vld [vmem:[%s1 + $0xc8] sm:$0xff]
    %v1368 = vld [vmem:[%s1 + $0xd0] sm:$0xff]
    %v1369 = vld [vmem:[%s1 + $0xd8] sm:$0xff]
    %v1370 = vld [vmem:[%s1 + $0xe0] sm:$0xff]
    %v1371 = vld [vmem:[%s1 + $0xe8] sm:$0x1]
    %v1372 = vlaneseq
    %v1373 = vshrl.u32 %v1372, 7
    %v1374 = vsub.s32 0, %v1373
    %v1375 = vrot.slane %v1371, %v1374
    %v1377 = vsel %vm50, %v1366, 0
    %1379 = vmatprep.subr.mxu0 0.0
    %1380 = vmatpush1.msra.mxu0 %v1367
    %1381 = vmatprep.subr.mxu0 0.0
    %1382 = vmatpush1.msra.mxu0 %v1368
    %1383 = vmatprep.subr.mxu0 0.0
    %1384 = vmatpush1.msra.mxu0 %v1369
    %1385 = vmatprep.subr.mxu0 0.0
    %1386 = vmatpush1.msra.mxu0 %v1370
    %1387 = vmatprep.subr.mxu0 0.0
    %1388 = vmatpush1.msra.mxu0 0.0
    %1389 = vmatprep.subr.mxu0 0.0
    %1390 = vmatpush1.msra.mxu0 0.0
    %1391 = vmatprep.subr.mxu0 0.0
    %1392 = vmatpush1.msra.mxu0 0.0
    %1393 = vmatprep.subr.mxu0 0.0
    %1394 = vmatpush1.msra.mxu0 0.0
    %1395 = vmatprep.subr.mxu0 0.0
    %1396 = vmatpush1.msra.mxu0 0.0
    %1397 = vmatprep.subr.mxu0 0.0
    %1398 = vmatpush1.msra.mxu0 0.0
    %1399 = vmatprep.subr.mxu0 0.0
    %1400 = vmatpush1.msra.mxu0 0.0
    %1401 = vmatprep.subr.mxu0 0.0
    %1402 = vmatpush1.msra.mxu0 0.0
    %1403 = vmatprep.subr.mxu0 0.0
    %1404 = vmatpush1.msra.mxu0 0.0
    %1405 = vmatprep.subr.mxu0 0.0
    %1406 = vmatpush1.msra.mxu0 0.0
    %1407 = vmatprep.subr.mxu0 0.0
    %1408 = vmatpush1.msra.mxu0 0.0
    %1409 = vmatprep.subr.mxu0 0.0
    %1410 = vmatpush1.msra.mxu0 0.0
    %1411 = vmatprep.subr.mxu0 0.0
    %1412 = vmatpush1.msra.mxu0 0.0
    %1413 = vmatprep.subr.mxu0 0.0
    %1414 = vmatpush1.msra.mxu0 0.0
    %1415 = vmatprep.subr.mxu0 0.0
    %1416 = vmatpush1.msra.mxu0 0.0
    %1417 = vmatprep.subr.mxu0 0.0
    %1418 = vmatpush1.msra.mxu0 0.0
    %1419 = vmatprep.subr.mxu0 0.0
    %1420 = vmatpush1.msra.mxu0 0.0
    %1421 = vmatprep.subr.mxu0 0.0
    %1422 = vmatpush1.msra.mxu0 0.0
    %1423 = vmatprep.subr.mxu0 0.0
    %1424 = vmatpush1.msra.mxu0 0.0
    %1425 = vmatprep.subr.mxu0 0.0
    %1426 = vmatpush1.msra.mxu0 0.0
    %1427 = vmatprep.subr.mxu0 0.0
    %1428 = vmatpush1.msra.mxu0 0.0
    %1429 = vmatprep.subr.mxu0 0.0
    %1430 = vmatpush1.msra.mxu0 0.0
    %1431 = vmatprep.subr.mxu0 0.0
    %1432 = vmatpush1.msra.mxu0 0.0
    %1433 = vmatprep.subr.mxu0 0.0
    %1434 = vmatpush1.msra.mxu0 0.0
    %1435 = vmatprep.subr.mxu0 0.0
    %1436 = vmatpush1.msra.mxu0 0.0
    %1437 = vmatprep.subr.mxu0 0.0
    %1438 = vmatpush1.msra.mxu0 0.0
    %1439 = vmatprep.subr.mxu0 0.0
    %1440 = vmatpush1.msra.mxu0 0.0
    %1441 = vmatprep.subr.mxu0 0.0
    %1442 = vmatpush1.msra.mxu0 0.0
    %1443 = vmatprep.mubr.f32.mxu0 0.0
    %1444 = vmatmul.mubr.f32.gmra.mrb[0].mxu0 %v1377
    %v1445 = vpop.f32.mrb[0].mxu0
    %v1446 = vadd.f32 %v1375, %v1445
    %v1447 = vpop.f32.mrb[0].mxu0
    %1448 = vdwg.mxu0
    %v1449 = vmax.f32 %v1446, 0.0
    %v1450 = vld [vmem:[%s1 + $0xf0] sm:$0xff]
    %v1451 = vld [vmem:[%s1 + $0xf8] sm:$0xff]
    %v1452 = vld [vmem:[%s1 + $0x100] sm:$0xff]
    %v1453 = vld [vmem:[%s1 + $0x108] sm:$0xff]
    %v1454 = vld [vmem:[%s1 + $0x110] sm:$0x1]
    %v1455 = vlaneseq
    %v1456 = vshrl.u32 %v1455, 7
    %v1457 = vsub.s32 0, %v1456
    %v1458 = vrot.slane %v1454, %v1457
    %v1460 = vsel %vm50, %v1449, 0
    %1462 = vmatprep.subr.mxu0 0.0
    %1463 = vmatpush1.msra.mxu0 %v1450
    %1464 = vmatprep.subr.mxu0 0.0
    %1465 = vmatpush1.msra.mxu0 %v1451
    %1466 = vmatprep.subr.mxu0 0.0
    %1467 = vmatpush1.msra.mxu0 %v1452
    %1468 = vmatprep.subr.mxu0 0.0
    %1469 = vmatpush1.msra.mxu0 %v1453
    %1470 = vmatprep.subr.mxu0 0.0
    %1471 = vmatpush1.msra.mxu0 0.0
    %1472 = vmatprep.subr.mxu0 0.0
    %1473 = vmatpush1.msra.mxu0 0.0
    %1474 = vmatprep.subr.mxu0 0.0
    %1475 = vmatpush1.msra.mxu0 0.0
    %1476 = vmatprep.subr.mxu0 0.0
    %1477 = vmatpush1.msra.mxu0 0.0
    %1478 = vmatprep.subr.mxu0 0.0
    %1479 = vmatpush1.msra.mxu0 0.0
    %1480 = vmatprep.subr.mxu0 0.0
    %1481 = vmatpush1.msra.mxu0 0.0
    %1482 = vmatprep.subr.mxu0 0.0
    %1483 = vmatpush1.msra.mxu0 0.0
    %1484 = vmatprep.subr.mxu0 0.0
    %1485 = vmatpush1.msra.mxu0 0.0
    %1486 = vmatprep.subr.mxu0 0.0
    %1487 = vmatpush1.msra.mxu0 0.0
    %1488 = vmatprep.subr.mxu0 0.0
    %1489 = vmatpush1.msra.mxu0 0.0
    %1490 = vmatprep.subr.mxu0 0.0
    %1491 = vmatpush1.msra.mxu0 0.0
    %1492 = vmatprep.subr.mxu0 0.0
    %1493 = vmatpush1.msra.mxu0 0.0
    %1494 = vmatprep.subr.mxu0 0.0
    %1495 = vmatpush1.msra.mxu0 0.0
    %1496 = vmatprep.subr.mxu0 0.0
    %1497 = vmatpush1.msra.mxu0 0.0
    %1498 = vmatprep.subr.mxu0 0.0
    %1499 = vmatpush1.msra.mxu0 0.0
    %1500 = vmatprep.subr.mxu0 0.0
    %1501 = vmatpush1.msra.mxu0 0.0
    %1502 = vmatprep.subr.mxu0 0.0
    %1503 = vmatpush1.msra.mxu0 0.0
    %1504 = vmatprep.subr.mxu0 0.0
    %1505 = vmatpush1.msra.mxu0 0.0
    %1506 = vmatprep.subr.mxu0 0.0
    %1507 = vmatpush1.msra.mxu0 0.0
    %1508 = vmatprep.subr.mxu0 0.0
    %1509 = vmatpush1.msra.mxu0 0.0
    %1510 = vmatprep.subr.mxu0 0.0
    %1511 = vmatpush1.msra.mxu0 0.0
    %1512 = vmatprep.subr.mxu0 0.0
    %1513 = vmatpush1.msra.mxu0 0.0
    %1514 = vmatprep.subr.mxu0 0.0
    %1515 = vmatpush1.msra.mxu0 0.0
    %1516 = vmatprep.subr.mxu0 0.0
    %1517 = vmatpush1.msra.mxu0 0.0
    %1518 = vmatprep.subr.mxu0 0.0
    %1519 = vmatpush1.msra.mxu0 0.0
    %1520 = vmatprep.subr.mxu0 0.0
    %1521 = vmatpush1.msra.mxu0 0.0
    %1522 = vmatprep.subr.mxu0 0.0
    %1523 = vmatpush1.msra.mxu0 0.0
    %1524 = vmatprep.subr.mxu0 0.0
    %1525 = vmatpush1.msra.mxu0 0.0
    %1526 = vmatprep.mubr.f32.mxu0 0.0
    %1527 = vmatmul.mubr.f32.gmra.mrb[0].mxu0 %v1460
    %v1528 = vpop.f32.mrb[0].mxu0
    %v1529 = vadd.f32 %v1458, %v1528
    %v1530 = vpop.f32.mrb[0].mxu0
    %1531 = vdwg.mxu0
    %v1532 = vmax.f32 %v1529, 0.0
    %v1533 = vld [vmem:[%s1 + $0x118] sm:$0xff]
    %v1534 = vld [vmem:[%s1 + $0x120] sm:$0xff]
    %v1535 = vld [vmem:[%s1 + $0x128] sm:$0xff]
    %v1536 = vld [vmem:[%s1 + $0x130] sm:$0xff]
    %v1537 = vld [vmem:[%s1 + $0x138] sm:$0x1]
    %v1538 = vlaneseq
    %v1539 = vshrl.u32 %v1538, 7
    %v1540 = vsub.s32 0, %v1539
    %v1541 = vrot.slane %v1537, %v1540
    %v1543 = vsel %vm50, %v1532, 0
    %1545 = vmatprep.subr.mxu0 0.0
    %1546 = vmatpush1.msra.mxu0 %v1533
    %1547 = vmatprep.subr.mxu0 0.0
    %1548 = vmatpush1.msra.mxu0 %v1534
    %1549 = vmatprep.subr.mxu0 0.0
    %1550 = vmatpush1.msra.mxu0 %v1535
    %1551 = vmatprep.subr.mxu0 0.0
    %1552 = vmatpush1.msra.mxu0 %v1536
    %1553 = vmatprep.subr.mxu0 0.0
    %1554 = vmatpush1.msra.mxu0 0.0
    %1555 = vmatprep.subr.mxu0 0.0
    %1556 = vmatpush1.msra.mxu0 0.0
    %1557 = vmatprep.subr.mxu0 0.0
    %1558 = vmatpush1.msra.mxu0 0.0
    %1559 = vmatprep.subr.mxu0 0.0
    %1560 = vmatpush1.msra.mxu0 0.0
    %1561 = vmatprep.subr.mxu0 0.0
    %1562 = vmatpush1.msra.mxu0 0.0
    %1563 = vmatprep.subr.mxu0 0.0
    %1564 = vmatpush1.msra.mxu0 0.0
    %1565 = vmatprep.subr.mxu0 0.0
    %1566 = vmatpush1.msra.mxu0 0.0
    %1567 = vmatprep.subr.mxu0 0.0
    %1568 = vmatpush1.msra.mxu0 0.0
    %1569 = vmatprep.subr.mxu0 0.0
    %1570 = vmatpush1.msra.mxu0 0.0
    %1571 = vmatprep.subr.mxu0 0.0
    %1572 = vmatpush1.msra.mxu0 0.0
    %1573 = vmatprep.subr.mxu0 0.0
    %1574 = vmatpush1.msra.mxu0 0.0
    %1575 = vmatprep.subr.mxu0 0.0
    %1576 = vmatpush1.msra.mxu0 0.0
    %1577 = vmatprep.subr.mxu0 0.0
    %1578 = vmatpush1.msra.mxu0 0.0
    %1579 = vmatprep.subr.mxu0 0.0
    %1580 = vmatpush1.msra.mxu0 0.0
    %1581 = vmatprep.subr.mxu0 0.0
    %1582 = vmatpush1.msra.mxu0 0.0
    %1583 = vmatprep.subr.mxu0 0.0
    %1584 = vmatpush1.msra.mxu0 0.0
    %1585 = vmatprep.subr.mxu0 0.0
    %1586 = vmatpush1.msra.mxu0 0.0
    %1587 = vmatprep.subr.mxu0 0.0
    %1588 = vmatpush1.msra.mxu0 0.0
    %1589 = vmatprep.subr.mxu0 0.0
    %1590 = vmatpush1.msra.mxu0 0.0
    %1591 = vmatprep.subr.mxu0 0.0
    %1592 = vmatpush1.msra.mxu0 0.0
    %1593 = vmatprep.subr.mxu0 0.0
    %1594 = vmatpush1.msra.mxu0 0.0
    %1595 = vmatprep.subr.mxu0 0.0
    %1596 = vmatpush1.msra.mxu0 0.0
    %1597 = vmatprep.subr.mxu0 0.0
    %1598 = vmatpush1.msra.mxu0 0.0
    %1599 = vmatprep.subr.mxu0 0.0
    %1600 = vmatpush1.msra.mxu0 0.0
    %1601 = vmatprep.subr.mxu0 0.0
    %1602 = vmatpush1.msra.mxu0 0.0
    %1603 = vmatprep.subr.mxu0 0.0
    %1604 = vmatpush1.msra.mxu0 0.0
    %1605 = vmatprep.subr.mxu0 0.0
    %1606 = vmatpush1.msra.mxu0 0.0
    %1607 = vmatprep.subr.mxu0 0.0
    %1608 = vmatpush1.msra.mxu0 0.0
    %1609 = vmatprep.mubr.f32.mxu0 0.0
    %1610 = vmatmul.mubr.f32.gmra.mrb[0].mxu0 %v1543
    %v1611 = vpop.f32.mrb[0].mxu0
    %v1612 = vadd.f32 %v1541, %v1611
    %v1613 = vpop.f32.mrb[0].mxu0
    %1614 = vdwg.mxu0
    %vm1615 = vcmask 19456
    %1616 = vst.msk [vmem:[#allocation2] sm:$0xf] %vm1615, %v1612
    // Predicated region
    $region10: #{rel_overall_forward.1} parent=1 // pred_check
      _
    $region11: #{rel_overall_forward.1} parent=1 // pred_check_branch
      %1618 = sbr.rel (0) target = $region13
    $region12: #{rel_overall_forward.1} parent=1 // pred_region
      %s1620 = ssub.s32 64, 64
      %1621 = vsyncadd [#allocation3], %s1620
      %s1623 = sshll.u32 [#allocation2], 4
      %s1624 = int_to_ptr.vmem [resolvable:$true] %s1623
      %1626 = dma.vmem_to_hbm [thread:$0]  %s1624, 64, %s2, [#allocation3]
    $region13: #{rel_overall_forward.1} parent=1 // pred_fallthru
      _
    // Predicated region
    $region14: #{rel_overall_forward.1} parent=1 // pred_check
      _
    $region15: #{rel_overall_forward.1} parent=1 // pred_check_branch
      %1628 = sbr.rel (0) target = $region17
    $region16: #{rel_overall_forward.1} parent=1 // pred_region
      %1629 = dma.done [#allocation3], 64
    $region17: #{rel_overall_forward.1} parent=1 // pred_fallthru
      _
    %1630 = vsyncpa [#allocation3], 1

</llo_original>
